<compile_context>
chip_gen: v5e
topology: v5e:2x2
jax: 0.10.0
libtpu: 0.0.40
codegen_flags: <defaults>
</compile_context>

<pallas_src>
import functools
import numpy as np
import jax
import jax.numpy as jnp
from jax import lax
from jax.experimental import pallas as pl
from jax.experimental.pallas import tpu as pltpu


def atten2map_kernel(g2_ref, auxq_ref, auxk_ref, w_ref, out_ref, *,
                     nd, nh, smooth, has_gate, attnw_shift):
    blk_b, nnei, ni = g2_ref.shape

    g2 = g2_ref[...]                         # (blk_b, nnei, ni)
    auxq = auxq_ref[...]                     # (blk_b, nnei, 5): h2x,h2y,h2z,mask,sw
    auxk = auxk_ref[...]                     # (blk_b, 2, nnei): mask,sw
    w = w_ref[...]                           # (ni, 2*nh*nd), Q half pre-scaled by 1/sqrt(nd)

    h2 = auxq[:, :, 0:3]                     # (blk_b, nnei, 3)
    mask_q = auxq[:, :, 3:4]                 # (blk_b, nnei, 1)
    sw_q = auxq[:, :, 4:5]                   # (blk_b, nnei, 1)
    mask_k = auxk[:, 0:1, :]                 # (blk_b, 1, nnei)
    sw_k = auxk[:, 1:2, :]                   # (blk_b, 1, nnei)

    # ---- hot path: one big projection matmul on the MXU ----
    qk = jnp.dot(g2.reshape(blk_b * nnei, ni), w,
                 preferred_element_type=jnp.float32)          # (blk_b*nnei, 2*nh*nd)
    qk = qk.reshape(blk_b, nnei, 2 * nh * nd)

    # h2 @ h2^T per item, contracting the minor (size-3) axis of both operands.
    h2h2t_raw = lax.dot_general(
        h2, h2,
        dimension_numbers=(((2,), (2,)), ((0,), (0,))),
        preferred_element_type=jnp.float32)                    # (blk_b, nnei, nnei)

    # ---- head-invariant factors, computed once ----
    mask_qk = jnp.logical_and(mask_q > 0.0, mask_k > 0.0)      # (blk_b, nnei, nnei)
    inv_sqrt3 = jnp.float32(3.0 ** -0.5)
    if smooth:
        sw_qk = sw_q * sw_k                                    # (blk_b, nnei, nnei)
        post = jnp.where(mask_qk, sw_qk, 0.0) * (h2h2t_raw * inv_sqrt3)
    else:
        post = jnp.where(mask_qk, h2h2t_raw * inv_sqrt3, 0.0)
        mask_k_b = mask_k > 0.0                                # (blk_b, 1, nnei)

    # Per-head QK^T + softmax.  nh is small and static; the head loop keeps lowering
    # simple and VMEM pressure bounded (one (nnei, nnei) score tile live at a time).
    dn = (((2,), (2,)), ((0,), (0,)))                          # contract nd, batch blk_b
    for h in range(nh):
        q = qk[:, :, h * nd:(h + 1) * nd]                      # (blk_b, nnei, nd)
        k = qk[:, :, (nh + h) * nd:(nh + h + 1) * nd]          # (blk_b, nnei, nd)
        s = lax.dot_general(q, k, dimension_numbers=dn,
                            preferred_element_type=jnp.float32)  # (blk_b, nnei, nnei)
        if has_gate:
            s = s * h2h2t_raw
        if smooth:
            s = (s + attnw_shift) * sw_qk - attnw_shift
        else:
            s = jnp.where(mask_k_b, s, -jnp.inf)

        # softmax over the key axis; normalization uses an EXACT reciprocal of the
        # tiny (blk_b, nnei, 1) denominator (the approximate EUP recip previously
        # produced ~3e-3 relative error and failed the tolerance check).
        m = jnp.max(s, axis=-1, keepdims=True)
        if not smooth:
            # guard fully-masked rows (all -inf): keep arithmetic finite,
            # result is zeroed by `post` anyway.
            m = jnp.maximum(m, jnp.float32(-1e30))
        e = jnp.exp(s - m)
        denom = jnp.sum(e, axis=-1, keepdims=True)
        if not smooth:
            denom = jnp.maximum(denom, jnp.float32(1e-30))
        attn = e * (jnp.float32(1.0) / denom)

        out_ref[:, h, :, :] = (attn * post).astype(out_ref.dtype)


def _vmem_budget_bytes():
    """Generation-aware VMEM budget.  Falls back to a v7x-safe 64 MiB assumption."""
    phys = 64 * 1024 * 1024
    try:
        info = pltpu.get_tpu_info()
        phys = int(getattr(info, "vmem_capacity_bytes", phys))
    except Exception:
        pass
    budget = int(phys * 0.70)       # for blk_b sizing (leave room for spills/runtime)
    limit = int(phys * 0.85)        # scoped VMEM limit handed to the compiler
    return budget, limit


def _pick_blk_b(B, nnei, ni, nd, nh, budget_bytes):
    """Number of (batch,nloc) items per grid step, sized against the VMEM budget
    using an honest per-item live-set estimate; keeps >=2 grid steps (pipelining,
    and 2-TC sharding on v7x) and prefers MXU-aligned / 8-multiple block sizes."""
    it = 4  # f32
    per_item = it * (
        2 * (nnei * ni + nnei * 5 + 2 * nnei + nh * nnei * nnei)   # double-buffered in/out blocks
        + nnei * 2 * nh * nd                                        # qk projection result
        + 8 * nnei * nnei)                                          # live (nnei, nnei) f32 temporaries
    fixed = it * 2 * ni * 2 * nh * nd                               # W block (double-buffered)
    cap = max(1, (budget_bytes - fixed) // per_item)
    if B >= 2:
        cap = min(cap, max(1, B // 2))                              # keep >= 2 grid steps
    cap = max(1, min(cap, B))

    divisors = [d for d in range(1, B + 1) if B % d == 0 and d <= cap]
    best = max(divisors)
    aligned = [d for d in divisors if (d * nnei) % 128 == 0 or d % 8 == 0]
    if aligned and 2 * max(aligned) >= best:
        best = max(aligned)
    return best


def atten2map(g2, h2, nlist_mask, sw, w, *, nd, nh,
              smooth=True, has_gate=False, attnw_shift=20.0, blk_b=None,
              compute_dtype=jnp.float32, out_dtype=jnp.float32, head_major=False):
    """Forward pass of Atten2Map.

    Returns (nb, nloc, nnei, nnei, nh) like the PyTorch module by default.
    head_major=True returns (nb, nloc, nh, nnei, nnei) directly, skipping the extra
    HBM transpose pass (recommended when the downstream consumer can accept it).
    compute_dtype=jnp.bfloat16 halves the projection DMA bytes and uses the native
    bf16 MXU path on v6e/v7x (accumulation stays f32); out_dtype=jnp.bfloat16 halves
    output HBM writes on write-bound v5e.  Defaults keep full f32 numerics.
    """
    nb, nloc, nnei, ni = g2.shape
    B = nb * nloc

    budget, vmem_limit = _vmem_budget_bytes()
    if blk_b is None:
        blk_b = _pick_blk_b(B, nnei, ni, nd, nh, budget)
    else:
        blk_b = max(1, min(int(blk_b), B))
        while B % blk_b != 0:
            blk_b -= 1

    g2f = g2.reshape(B, nnei, ni).astype(compute_dtype)

    # query-side auxiliary block: [h2 (3), mask, sw] on lanes
    auxq = jnp.concatenate(
        [h2.reshape(B, nnei, 3).astype(jnp.float32),
         nlist_mask.reshape(B, nnei, 1).astype(jnp.float32),
         sw.reshape(B, nnei, 1).astype(jnp.float32)], axis=-1)        # (B, nnei, 5)
    # key-side auxiliary block: rows [mask, sw], nnei lane-dense
    auxk = jnp.concatenate(
        [nlist_mask.reshape(B, 1, nnei).astype(jnp.float32),
         sw.reshape(B, 1, nnei).astype(jnp.float32)], axis=1)         # (B, 2, nnei)

    # torch layout: output feature o = d*(2*nh) + head  ->  head-major col = head*nd + d.
    # Fold 1/sqrt(nd) into the Q half (one-off on a tiny constant).
    w_hm = (w.reshape(ni, nd, 2 * nh)
             .transpose(0, 2, 1)
             .reshape(ni, 2 * nh * nd)
             .astype(jnp.float32))
    col_scale = jnp.concatenate(
        [jnp.full((nh * nd,), nd ** -0.5, dtype=jnp.float32),
         jnp.ones((nh * nd,), dtype=jnp.float32)])
    w_hm = (w_hm * col_scale[None, :]).astype(compute_dtype)

    kernel = functools.partial(atten2map_kernel, nd=nd, nh=nh, smooth=smooth,
                               has_gate=has_gate, attnw_shift=attnw_shift)
    out = pl.pallas_call(
        kernel,
        out_shape=jax.ShapeDtypeStruct((B, nh, nnei, nnei), out_dtype),
        grid_spec=pltpu.PrefetchScalarGridSpec(
            num_scalar_prefetch=0,
            grid=(B // blk_b,),
            in_specs=[
                pl.BlockSpec((blk_b, nnei, ni), lambda i: (i, 0, 0)),
                pl.BlockSpec((blk_b, nnei, 5), lambda i: (i, 0, 0)),
                pl.BlockSpec((blk_b, 2, nnei), lambda i: (i, 0, 0)),
                pl.BlockSpec((ni, 2 * nh * nd), lambda i: (0, 0)),
            ],
            out_specs=pl.BlockSpec((blk_b, nh, nnei, nnei),
                                   lambda i: (i, 0, 0, 0)),
        ),
        compiler_params=pltpu.CompilerParams(
            dimension_semantics=("parallel",),
            vmem_limit_bytes=vmem_limit,
        ),
    )(g2f, auxq, auxk, w_hm)

    out5 = out.reshape(nb, nloc, nh, nnei, nnei)
    if head_major:
        return out5
    # Module layout (nb, nloc, nnei, nnei, nh).  This is one extra HBM pass over the
    # largest tensor; consumers that accept head-major should pass head_major=True.
    return jnp.transpose(out5, (0, 1, 3, 4, 2))


def atten2map_reference(g2, h2, nlist_mask, sw, w, nd, nh,
                        smooth=True, has_gate=False, attnw_shift=20.0):
    """Pure-JAX reference mirroring the PyTorch forward exactly."""
    nb, nloc, nnei, _ = g2.shape
    g2qk = jnp.einsum('blni,io->blno', g2, w).reshape(nb, nloc, nnei, nd, nh * 2)
    g2qk = jnp.transpose(g2qk, (0, 1, 4, 2, 3))
    g2q, g2k = g2qk[:, :, :nh], g2qk[:, :, nh:]
    attnw = jnp.einsum('blhqd,blhkd->blhqk', g2q, g2k) / nd ** 0.5
    if has_gate:
        attnw = attnw * jnp.einsum('blqd,blkd->blqk', h2, h2)[:, :, None]
    if smooth:
        attnw = (attnw + attnw_shift) * sw[:, :, None, :, None] * sw[:, :, None, None, :] - attnw_shift
    else:
        attnw = jnp.where(nlist_mask[:, :, None, None, :], attnw, -jnp.inf)
    attnw = jax.nn.softmax(attnw, axis=-1)
    attnw = jnp.where(nlist_mask[:, :, None, None, :], attnw, 0.0)
    attnw = jnp.where(nlist_mask[:, :, None, :, None], attnw, 0.0)
    if smooth:
        attnw = attnw * sw[:, :, None, :, None] * sw[:, :, None, None, :]
    h2h2t = jnp.einsum('blqd,blkd->blqk', h2, h2) / 3.0 ** 0.5
    ret = attnw * h2h2t[:, :, None]
    return jnp.transpose(ret, (0, 1, 3, 4, 2))


if __name__ == "__main__":
    nb, nloc, nnei, ni, nd, nh = 2, 4, 8, 32, 16, 4

    key = jax.random.PRNGKey(0)
    k1, k2, k3, k4, kw = jax.random.split(key, 5)
    g2 = jax.random.normal(k1, (nb, nloc, nnei, ni), jnp.float32)
    h2 = jax.random.normal(k2, (nb, nloc, nnei, 3), jnp.float32)
    nlist_mask = jax.random.uniform(k3, (nb, nloc, nnei)) > 0.2
    sw = jax.random.uniform(k4, (nb, nloc, nnei)) * nlist_mask.astype(jnp.float32)
    # deterministic mapqk weight, stored as (ni, nd*2*nh) == torch weight.T
    w = jax.random.normal(kw, (ni, nd * 2 * nh), jnp.float32) * 0.1

    # Full f32 path with exact softmax normalization: only f32 rounding differences
    # versus the pure-JAX reference remain.
    TOL = dict(atol=1e-4, rtol=1e-3)

    # smooth (default) path, module output layout
    out = atten2map(g2, h2, nlist_mask, sw, w, nd=nd, nh=nh)
    out = jax.block_until_ready(out)
    assert out.shape == (nb, nloc, nnei, nnei, nh)
    ref = atten2map_reference(g2, h2, nlist_mask, sw, w, nd, nh)
    np.testing.assert_allclose(np.asarray(out), np.asarray(ref), **TOL)

    # head-major output (skips the extra HBM transpose pass)
    out_hm = atten2map(g2, h2, nlist_mask, sw, w, nd=nd, nh=nh, head_major=True)
    out_hm = jax.block_until_ready(out_hm)
    np.testing.assert_allclose(np.asarray(out_hm),
                               np.asarray(jnp.transpose(ref, (0, 1, 4, 2, 3))), **TOL)

    # non-smooth + gated path
    out2 = atten2map(g2, h2, nlist_mask, sw, w, nd=nd, nh=nh,
                     smooth=False, has_gate=True)
    out2 = jax.block_until_ready(out2)
    ref2 = atten2map_reference(g2, h2, nlist_mask, sw, w, nd, nh,
                               smooth=False, has_gate=True)
    np.testing.assert_allclose(np.asarray(out2), np.asarray(ref2), **TOL)

    print("KERNEL_OK")
</pallas_src>

<mosaic_0001>
module attributes {stable_mosaic.version = 11 : i64} {
  func.func @atten2map_kernel(%arg0: i32, %arg1: memref<4x8x32xf32, #tpu.memory_space<vmem>>, %arg2: memref<4x8x5xf32, #tpu.memory_space<vmem>>, %arg3: memref<4x2x8xf32, #tpu.memory_space<vmem>>, %arg4: memref<32x128xf32, #tpu.memory_space<vmem>>, %arg5: memref<4x4x8x8xf32, #tpu.memory_space<vmem>>) attributes {dimension_semantics = [#tpu.dimension_semantics<parallel>], iteration_bounds = array<i64: 2>, scalar_prefetch = 0 : i64, scratch_operands = 0 : i64, tpu.core_type = #tpu.core_type<tc>, window_params = [{transform_indices = @transform_0, window_bounds = array<i64: 4, 8, 32>}, {transform_indices = @transform_1, window_bounds = array<i64: 4, 8, 5>}, {transform_indices = @transform_2, window_bounds = array<i64: 4, 2, 8>}, {pipeline_mode = #tpu.pipeline_mode<synchronous>, transform_indices = @transform_3, window_bounds = array<i64: 32, 128>}, {transform_indices = @transform_4, window_bounds = array<i64: 4, 4, 8, 8>}]} {
    %c0 = arith.constant 0 : index
    %c0_0 = arith.constant 0 : index
    %c0_1 = arith.constant 0 : index
    %0 = vector.load %arg1[%c0, %c0_0, %c0_1] : memref<4x8x32xf32, #tpu.memory_space<vmem>>, vector<4x8x32xf32>
    %c0_2 = arith.constant 0 : index
    %c0_3 = arith.constant 0 : index
    %c0_4 = arith.constant 0 : index
    %1 = vector.load %arg2[%c0_2, %c0_3, %c0_4] : memref<4x8x5xf32, #tpu.memory_space<vmem>>, vector<4x8x5xf32>
    %c0_5 = arith.constant 0 : index
    %c0_6 = arith.constant 0 : index
    %c0_7 = arith.constant 0 : index
    %2 = vector.load %arg3[%c0_5, %c0_6, %c0_7] : memref<4x2x8xf32, #tpu.memory_space<vmem>>, vector<4x2x8xf32>
    %c0_8 = arith.constant 0 : index
    %c0_9 = arith.constant 0 : index
    %3 = vector.load %arg4[%c0_8, %c0_9] : memref<32x128xf32, #tpu.memory_space<vmem>>, vector<32x128xf32>
    %4 = vector.extract_strided_slice %1 {offsets = [0, 0, 0], sizes = [4, 8, 3], strides = [1, 1, 1]} : vector<4x8x5xf32> to vector<4x8x3xf32>
    %5 = vector.extract_strided_slice %1 {offsets = [0, 0, 3], sizes = [4, 8, 1], strides = [1, 1, 1]} : vector<4x8x5xf32> to vector<4x8x1xf32>
    %6 = vector.extract_strided_slice %1 {offsets = [0, 0, 4], sizes = [4, 8, 1], strides = [1, 1, 1]} : vector<4x8x5xf32> to vector<4x8x1xf32>
    %7 = vector.extract_strided_slice %2 {offsets = [0, 0, 0], sizes = [4, 1, 8], strides = [1, 1, 1]} : vector<4x2x8xf32> to vector<4x1x8xf32>
    %8 = vector.extract_strided_slice %2 {offsets = [0, 1, 0], sizes = [4, 1, 8], strides = [1, 1, 1]} : vector<4x2x8xf32> to vector<4x1x8xf32>
    %9 = vector.shape_cast %0 : vector<4x8x32xf32> to vector<32x32xf32>
    %cst = arith.constant dense<0.000000e+00> : vector<32x128xf32>
    %10 = tpu.matmul %9, %3, %cst {dimension_numbers = #tpu.dot_dimension_numbers<[1], [0], [0], [1], [0, 0, 1, 1], [], []>} : vector<32x32xf32>, vector<32x128xf32>, vector<32x128xf32> -> vector<32x128xf32>
    %11 = vector.shape_cast %10 : vector<32x128xf32> to vector<4x8x128xf32>
    %cst_10 = arith.constant dense<0.000000e+00> : vector<4x8x8xf32>
    %12 = tpu.matmul %4, %4, %cst_10 {dimension_numbers = #tpu.dot_dimension_numbers<[2], [2], [1], [1], [0, 0, 0, 1, 1, 1], [0], [0]>} : vector<4x8x3xf32>, vector<4x8x3xf32>, vector<4x8x8xf32> -> vector<4x8x8xf32>
    %cst_11 = arith.constant 0.000000e+00 : f32
    %13 = vector.broadcast %cst_11 : f32 to vector<4x8x1xf32>
    %14 = arith.cmpf ogt, %5, %13 : vector<4x8x1xf32>
    %cst_12 = arith.constant 0.000000e+00 : f32
    %15 = vector.broadcast %cst_12 : f32 to vector<4x1x8xf32>
    %16 = arith.cmpf ogt, %7, %15 : vector<4x1x8xf32>
    %17 = vector.broadcast %14 : vector<4x8x1xi1> to vector<4x8x8xi1>
    %18 = vector.broadcast %16 : vector<4x1x8xi1> to vector<4x8x8xi1>
    %19 = arith.andi %17, %18 : vector<4x8x8xi1>
    %20 = vector.broadcast %6 : vector<4x8x1xf32> to vector<4x8x8xf32>
    %21 = vector.broadcast %8 : vector<4x1x8xf32> to vector<4x8x8xf32>
    %22 = arith.mulf %20, %21 : vector<4x8x8xf32>
    %cst_13 = arith.constant 0.000000e+00 : f32
    %23 = vector.broadcast %cst_13 : f32 to vector<4x8x8xf32>
    %24 = arith.select %19, %22, %23 : vector<4x8x8xi1>, vector<4x8x8xf32>
    %cst_14 = arith.constant 0.577350259 : f32
    %25 = vector.broadcast %cst_14 : f32 to vector<4x8x8xf32>
    %26 = arith.mulf %12, %25 : vector<4x8x8xf32>
    %27 = arith.mulf %24, %26 : vector<4x8x8xf32>
    %28 = vector.extract_strided_slice %11 {offsets = [0, 0, 0], sizes = [4, 8, 16], strides = [1, 1, 1]} : vector<4x8x128xf32> to vector<4x8x16xf32>
    %29 = vector.extract_strided_slice %11 {offsets = [0, 0, 64], sizes = [4, 8, 16], strides = [1, 1, 1]} : vector<4x8x128xf32> to vector<4x8x16xf32>
    %cst_15 = arith.constant dense<0.000000e+00> : vector<4x8x8xf32>
    %30 = tpu.matmul %28, %29, %cst_15 {dimension_numbers = #tpu.dot_dimension_numbers<[2], [2], [1], [1], [0, 0, 0, 1, 1, 1], [0], [0]>} : vector<4x8x16xf32>, vector<4x8x16xf32>, vector<4x8x8xf32> -> vector<4x8x8xf32>
    %cst_16 = arith.constant 2.000000e+01 : f32
    %31 = vector.broadcast %cst_16 : f32 to vector<4x8x8xf32>
    %32 = arith.addf %30, %31 : vector<4x8x8xf32>
    %33 = arith.mulf %32, %22 : vector<4x8x8xf32>
    %cst_17 = arith.constant 2.000000e+01 : f32
    %34 = vector.broadcast %cst_17 : f32 to vector<4x8x8xf32>
    %35 = arith.subf %33, %34 : vector<4x8x8xf32>
    %cst_18 = arith.constant dense<0xFF800000> : vector<4x8xf32>
    %36 = vector.multi_reduction <maximumf>, %35, %cst_18 [2] : vector<4x8x8xf32> to vector<4x8xf32>
    %37 = vector.shape_cast %36 : vector<4x8xf32> to vector<4x8x1xf32>
    %38 = vector.broadcast %37 : vector<4x8x1xf32> to vector<4x8x8xf32>
    %39 = arith.subf %35, %38 : vector<4x8x8xf32>
    %40 = math.exp %39 : vector<4x8x8xf32>
    %cst_19 = arith.constant dense<0.000000e+00> : vector<4x8xf32>
    %41 = vector.multi_reduction <add>, %40, %cst_19 [2] : vector<4x8x8xf32> to vector<4x8xf32>
    %42 = vector.shape_cast %41 : vector<4x8xf32> to vector<4x8x1xf32>
    %cst_20 = arith.constant 1.000000e+00 : f32
    %43 = vector.broadcast %cst_20 : f32 to vector<4x8x1xf32>
    %44 = arith.divf %43, %42 : vector<4x8x1xf32>
    %45 = vector.broadcast %44 : vector<4x8x1xf32> to vector<4x8x8xf32>
    %46 = arith.mulf %40, %45 : vector<4x8x8xf32>
    %47 = arith.mulf %46, %27 : vector<4x8x8xf32>
    %c0_21 = arith.constant 0 : index
    %c0_22 = arith.constant 0 : index
    %c0_23 = arith.constant 0 : index
    %c0_24 = arith.constant 0 : index
    %48 = vector.load %arg5[%c0_21, %c0_22, %c0_23, %c0_24] : memref<4x4x8x8xf32, #tpu.memory_space<vmem>>, vector<4x1x8x8xf32>
    %49 = vector.shape_cast %48 : vector<4x1x8x8xf32> to vector<4x8x8xf32>
    %50 = vector.shape_cast %47 : vector<4x8x8xf32> to vector<4x1x8x8xf32>
    tpu.vector_store %arg5[%c0_21, %c0_22, %c0_23, %c0_24], %50 {strides = array<i32>} : memref<4x4x8x8xf32, #tpu.memory_space<vmem>>, vector<4x1x8x8xf32>,
    %51 = vector.extract_strided_slice %11 {offsets = [0, 0, 16], sizes = [4, 8, 16], strides = [1, 1, 1]} : vector<4x8x128xf32> to vector<4x8x16xf32>
    %52 = vector.extract_strided_slice %11 {offsets = [0, 0, 80], sizes = [4, 8, 16], strides = [1, 1, 1]} : vector<4x8x128xf32> to vector<4x8x16xf32>
    %cst_25 = arith.constant dense<0.000000e+00> : vector<4x8x8xf32>
    %53 = tpu.matmul %51, %52, %cst_25 {dimension_numbers = #tpu.dot_dimension_numbers<[2], [2], [1], [1], [0, 0, 0, 1, 1, 1], [0], [0]>} : vector<4x8x16xf32>, vector<4x8x16xf32>, vector<4x8x8xf32> -> vector<4x8x8xf32>
    %cst_26 = arith.constant 2.000000e+01 : f32
    %54 = vector.broadcast %cst_26 : f32 to vector<4x8x8xf32>
    %55 = arith.addf %53, %54 : vector<4x8x8xf32>
    %56 = arith.mulf %55, %22 : vector<4x8x8xf32>
    %cst_27 = arith.constant 2.000000e+01 : f32
    %57 = vector.broadcast %cst_27 : f32 to vector<4x8x8xf32>
    %58 = arith.subf %56, %57 : vector<4x8x8xf32>
    %cst_28 = arith.constant dense<0xFF800000> : vector<4x8xf32>
    %59 = vector.multi_reduction <maximumf>, %58, %cst_28 [2] : vector<4x8x8xf32> to vector<4x8xf32>
    %60 = vector.shape_cast %59 : vector<4x8xf32> to vector<4x8x1xf32>
    %61 = vector.broadcast %60 : vector<4x8x1xf32> to vector<4x8x8xf32>
    %62 = arith.subf %58, %61 : vector<4x8x8xf32>
    %63 = math.exp %62 : vector<4x8x8xf32>
    %cst_29 = arith.constant dense<0.000000e+00> : vector<4x8xf32>
    %64 = vector.multi_reduction <add>, %63, %cst_29 [2] : vector<4x8x8xf32> to vector<4x8xf32>
    %65 = vector.shape_cast %64 : vector<4x8xf32> to vector<4x8x1xf32>
    %cst_30 = arith.constant 1.000000e+00 : f32
    %66 = vector.broadcast %cst_30 : f32 to vector<4x8x1xf32>
    %67 = arith.divf %66, %65 : vector<4x8x1xf32>
    %68 = vector.broadcast %67 : vector<4x8x1xf32> to vector<4x8x8xf32>
    %69 = arith.mulf %63, %68 : vector<4x8x8xf32>
    %70 = arith.mulf %69, %27 : vector<4x8x8xf32>
    %c0_31 = arith.constant 0 : index
    %c1 = arith.constant 1 : index
    %c0_32 = arith.constant 0 : index
    %c0_33 = arith.constant 0 : index
    %71 = vector.load %arg5[%c0_31, %c1, %c0_32, %c0_33] : memref<4x4x8x8xf32, #tpu.memory_space<vmem>>, vector<4x1x8x8xf32>
    %72 = vector.shape_cast %71 : vector<4x1x8x8xf32> to vector<4x8x8xf32>
    %73 = vector.shape_cast %70 : vector<4x8x8xf32> to vector<4x1x8x8xf32>
    tpu.vector_store %arg5[%c0_31, %c1, %c0_32, %c0_33], %73 {strides = array<i32>} : memref<4x4x8x8xf32, #tpu.memory_space<vmem>>, vector<4x1x8x8xf32>,
    %74 = vector.extract_strided_slice %11 {offsets = [0, 0, 32], sizes = [4, 8, 16], strides = [1, 1, 1]} : vector<4x8x128xf32> to vector<4x8x16xf32>
    %75 = vector.extract_strided_slice %11 {offsets = [0, 0, 96], sizes = [4, 8, 16], strides = [1, 1, 1]} : vector<4x8x128xf32> to vector<4x8x16xf32>
    %cst_34 = arith.constant dense<0.000000e+00> : vector<4x8x8xf32>
    %76 = tpu.matmul %74, %75, %cst_34 {dimension_numbers = #tpu.dot_dimension_numbers<[2], [2], [1], [1], [0, 0, 0, 1, 1, 1], [0], [0]>} : vector<4x8x16xf32>, vector<4x8x16xf32>, vector<4x8x8xf32> -> vector<4x8x8xf32>
    %cst_35 = arith.constant 2.000000e+01 : f32
    %77 = vector.broadcast %cst_35 : f32 to vector<4x8x8xf32>
    %78 = arith.addf %76, %77 : vector<4x8x8xf32>
    %79 = arith.mulf %78, %22 : vector<4x8x8xf32>
    %cst_36 = arith.constant 2.000000e+01 : f32
    %80 = vector.broadcast %cst_36 : f32 to vector<4x8x8xf32>
    %81 = arith.subf %79, %80 : vector<4x8x8xf32>
    %cst_37 = arith.constant dense<0xFF800000> : vector<4x8xf32>
    %82 = vector.multi_reduction <maximumf>, %81, %cst_37 [2] : vector<4x8x8xf32> to vector<4x8xf32>
    %83 = vector.shape_cast %82 : vector<4x8xf32> to vector<4x8x1xf32>
    %84 = vector.broadcast %83 : vector<4x8x1xf32> to vector<4x8x8xf32>
    %85 = arith.subf %81, %84 : vector<4x8x8xf32>
    %86 = math.exp %85 : vector<4x8x8xf32>
    %cst_38 = arith.constant dense<0.000000e+00> : vector<4x8xf32>
    %87 = vector.multi_reduction <add>, %86, %cst_38 [2] : vector<4x8x8xf32> to vector<4x8xf32>
    %88 = vector.shape_cast %87 : vector<4x8xf32> to vector<4x8x1xf32>
    %cst_39 = arith.constant 1.000000e+00 : f32
    %89 = vector.broadcast %cst_39 : f32 to vector<4x8x1xf32>
    %90 = arith.divf %89, %88 : vector<4x8x1xf32>
    %91 = vector.broadcast %90 : vector<4x8x1xf32> to vector<4x8x8xf32>
    %92 = arith.mulf %86, %91 : vector<4x8x8xf32>
    %93 = arith.mulf %92, %27 : vector<4x8x8xf32>
    %c0_40 = arith.constant 0 : index
    %c2 = arith.constant 2 : index
    %c0_41 = arith.constant 0 : index
    %c0_42 = arith.constant 0 : index
    %94 = vector.load %arg5[%c0_40, %c2, %c0_41, %c0_42] : memref<4x4x8x8xf32, #tpu.memory_space<vmem>>, vector<4x1x8x8xf32>
    %95 = vector.shape_cast %94 : vector<4x1x8x8xf32> to vector<4x8x8xf32>
    %96 = vector.shape_cast %93 : vector<4x8x8xf32> to vector<4x1x8x8xf32>
    tpu.vector_store %arg5[%c0_40, %c2, %c0_41, %c0_42], %96 {strides = array<i32>} : memref<4x4x8x8xf32, #tpu.memory_space<vmem>>, vector<4x1x8x8xf32>,
    %97 = vector.extract_strided_slice %11 {offsets = [0, 0, 48], sizes = [4, 8, 16], strides = [1, 1, 1]} : vector<4x8x128xf32> to vector<4x8x16xf32>
    %98 = vector.extract_strided_slice %11 {offsets = [0, 0, 112], sizes = [4, 8, 16], strides = [1, 1, 1]} : vector<4x8x128xf32> to vector<4x8x16xf32>
    %cst_43 = arith.constant dense<0.000000e+00> : vector<4x8x8xf32>
    %99 = tpu.matmul %97, %98, %cst_43 {dimension_numbers = #tpu.dot_dimension_numbers<[2], [2], [1], [1], [0, 0, 0, 1, 1, 1], [0], [0]>} : vector<4x8x16xf32>, vector<4x8x16xf32>, vector<4x8x8xf32> -> vector<4x8x8xf32>
    %cst_44 = arith.constant 2.000000e+01 : f32
    %100 = vector.broadcast %cst_44 : f32 to vector<4x8x8xf32>
    %101 = arith.addf %99, %100 : vector<4x8x8xf32>
    %102 = arith.mulf %101, %22 : vector<4x8x8xf32>
    %cst_45 = arith.constant 2.000000e+01 : f32
    %103 = vector.broadcast %cst_45 : f32 to vector<4x8x8xf32>
    %104 = arith.subf %102, %103 : vector<4x8x8xf32>
    %cst_46 = arith.constant dense<0xFF800000> : vector<4x8xf32>
    %105 = vector.multi_reduction <maximumf>, %104, %cst_46 [2] : vector<4x8x8xf32> to vector<4x8xf32>
    %106 = vector.shape_cast %105 : vector<4x8xf32> to vector<4x8x1xf32>
    %107 = vector.broadcast %106 : vector<4x8x1xf32> to vector<4x8x8xf32>
    %108 = arith.subf %104, %107 : vector<4x8x8xf32>
    %109 = math.exp %108 : vector<4x8x8xf32>
    %cst_47 = arith.constant dense<0.000000e+00> : vector<4x8xf32>
    %110 = vector.multi_reduction <add>, %109, %cst_47 [2] : vector<4x8x8xf32> to vector<4x8xf32>
    %111 = vector.shape_cast %110 : vector<4x8xf32> to vector<4x8x1xf32>
    %cst_48 = arith.constant 1.000000e+00 : f32
    %112 = vector.broadcast %cst_48 : f32 to vector<4x8x1xf32>
    %113 = arith.divf %112, %111 : vector<4x8x1xf32>
    %114 = vector.broadcast %113 : vector<4x8x1xf32> to vector<4x8x8xf32>
    %115 = arith.mulf %109, %114 : vector<4x8x8xf32>
    %116 = arith.mulf %115, %27 : vector<4x8x8xf32>
    %c0_49 = arith.constant 0 : index
    %c3 = arith.constant 3 : index
    %c0_50 = arith.constant 0 : index
    %c0_51 = arith.constant 0 : index
    %117 = vector.load %arg5[%c0_49, %c3, %c0_50, %c0_51] : memref<4x4x8x8xf32, #tpu.memory_space<vmem>>, vector<4x1x8x8xf32>
    %118 = vector.shape_cast %117 : vector<4x1x8x8xf32> to vector<4x8x8xf32>
    %119 = vector.shape_cast %116 : vector<4x8x8xf32> to vector<4x1x8x8xf32>
    tpu.vector_store %arg5[%c0_49, %c3, %c0_50, %c0_51], %119 {strides = array<i32>} : memref<4x4x8x8xf32, #tpu.memory_space<vmem>>, vector<4x1x8x8xf32>,
    return
  }
  func.func @transform_0(%arg0: i32) -> (i32, i32, i32) {
    %c0_i32 = arith.constant 0 : i32
    %c0_i32_0 = arith.constant 0 : i32
    %c0_i32_1 = arith.constant 0 : i32
    return %arg0, %c0_i32, %c0_i32_0 : i32, i32, i32
  }
  func.func @transform_1(%arg0: i32) -> (i32, i32, i32) {
    %c0_i32 = arith.constant 0 : i32
    %c0_i32_0 = arith.constant 0 : i32
    %c0_i32_1 = arith.constant 0 : i32
    return %arg0, %c0_i32, %c0_i32_0 : i32, i32, i32
  }
  func.func @transform_2(%arg0: i32) -> (i32, i32, i32) {
    %c0_i32 = arith.constant 0 : i32
    %c0_i32_0 = arith.constant 0 : i32
    %c0_i32_1 = arith.constant 0 : i32
    return %arg0, %c0_i32, %c0_i32_0 : i32, i32, i32
  }
  func.func @transform_3(%arg0: i32) -> (i32, i32) {
    %c0_i32 = arith.constant 0 : i32
    %c0_i32_0 = arith.constant 0 : i32
    %c0_i32_1 = arith.constant 0 : i32
    return %c0_i32, %c0_i32_0 : i32, i32
  }
  func.func @transform_4(%arg0: i32) -> (i32, i32, i32, i32) {
    %c0_i32 = arith.constant 0 : i32
    %c0_i32_0 = arith.constant 0 : i32
    %c0_i32_1 = arith.constant 0 : i32
    %c0_i32_2 = arith.constant 0 : i32
    return %arg0, %c0_i32, %c0_i32_0, %c0_i32_1 : i32, i32, i32, i32
  }
}

</mosaic_0001>

<llo_original>
// kernel: tpu_custom_call.1
$region0: #{tpu_custom_call.1}
  #allocation0 [shape = 'u32[]', space=smem, size = 0x4, offset = 0x4, fixed_abs, tag = 'smem constant byte address 0x4 - core index']
  #allocation1 [shape = 'u32[72,128]{1,0:T(1,128)}', space=vmem, size = 0x9000, scoped, tag = 'internal scratch']
  %s0 = inlined_call_operand.vmem [shape: f32[8,8,32], index: 0, kind: input, shape index: {}]
  %s1 = inlined_call_operand.vmem [shape: f32[8,8,5], index: 1, kind: input, shape index: {}]
  %s2 = inlined_call_operand.hbm [shape: f32[8,2,8], index: 2, kind: input, shape index: {}]
  %s3 = inlined_call_operand.vmem [shape: f32[32,128], index: 3, kind: input, shape index: {}]
  %s4 = inlined_call_operand.hbm [shape: f32[8,4,8,8], index: 4, kind: output, shape index: {}]
  %s5 = sld [smem:[#allocation0]]
  $region53: #{tpu_custom_call.1} parent=0
    _
  %s7 = ssub.s32 1, %s5
  %s8 = scalar_select 0, %s7, %s5
  $region1: #{tpu_custom_call.1} parent=0
    #allocation2 [shape = 'u8[8192]{0}', space=vmem, size = 0x2000, scoped, tag = 'input window, operand 2']
    #allocation3 [shape = 's32[2]{0}', space=sflag, size = 0x8, scoped, tag = 'scoped memory for tpu_custom_call.1']
    #allocation4 [shape = 's32[2]{0}', space=sflag, size = 0x8, scoped, tag = 'scoped memory for tpu_custom_call.1']
    #allocation5 [shape = 'u8[131072]{0}', space=vmem, size = 0x20000, scoped, tag = 'output window, operand 0']
    %9 = vsyncpa [#allocation3], 0
    %s10 = scalar_lea.sflag [#allocation3], 1
    %11 = vsyncpa %s10, 0
    %12 = vsyncpa [#allocation4], 0
    %s13 = scalar_lea.sflag [#allocation4], 1
    %14 = vsyncpa %s13, 0
    loop: start=0, step=1, limit=4
    $region2: #{tpu_custom_call.1} parent=1 // loop_pre_header
      _
    $region3: #{tpu_custom_call.1} parent=1 // loop_header
      %s16 = sphi 0, %s20
      %p17 = scmp.ge.s32.totalorder %s16, 4
      %s26 = sphi 0, %s28
      %s29 = sphi 0, %s26
      %s30 = sphi 0, %s29
      %s46 = sphi 0, %s30
      %s52 = sphi 0, %s54
      %s55 = sphi 0, %s52
      %s56 = sphi 0, %s55
      %s72 = sphi 0, %s56
      %s78 = sphi 0, %s80
      %s81 = sphi 0, %s78
      %s82 = sphi 0, %s81
      %s98 = sphi 0, %s82
      %s102 = sphi 0, %s102
      %s104 = sphi 0, %s102
      %s105 = sphi 0, %s104
      %s119 = sphi 0, %s105
      %s125 = sphi 0, %s127
      %s128 = sphi 0, %s125
      %s129 = sphi 0, %s128
      %s145 = sphi 0, %s129
    $region4: #{tpu_custom_call.1} parent=1 // loop_header_branch
      %19 = sbr.rel (%p17) target = $region8
    $region5: #{tpu_custom_call.1} parent=1 // loop_body
      %s21 = ssub.s32 %s16, 1
      %s22 = ssub.s32 %s16, 2
      %s23 = sadd.s32 %s16, 1
      %s24 = ssub.s32 %s16, %s23
      %p25 = scmp.eq.s32.totalorder %s24, 0
      %s27 = sadd.s32 %s26, 1
      %s28 = scalar_select %p25, %s26, %s27
      %p31 = pneg %p25
      %p32 = scmp.eq.s32.totalorder %s16, 1
      %p33 = por %p31, %p32
      %p34 = scmp.ne.s32.totalorder %s26, %s29
      %p35 = scmp.eq.s32.totalorder %s16, 0
      %p36 = por %p34, %p35
      %p37 = scmp.ne.s32.totalorder %s26, %s29
      %p38 = scmp.eq.s32.totalorder %s21, 1
      %p39 = por %p37, %p38
      %p40 = scmp.ne.s32.totalorder %s29, %s30
      %p41 = scmp.eq.s32.totalorder %s21, 0
      %p42 = por %p40, %p41
      %p43 = scmp.ne.s32.totalorder %s29, %s30
      %p44 = scmp.eq.s32.totalorder %s22, 1
      %p45 = por %p43, %p44
      %p47 = scmp.ne.s32.totalorder %s30, %s46
      %p48 = scmp.eq.s32.totalorder %s22, 0
      %p49 = por %p47, %p48
      %s50 = ssub.s32 %s16, %s23
      %p51 = scmp.eq.s32.totalorder %s50, 0
      %s53 = sadd.s32 %s52, 1
      %s54 = scalar_select %p51, %s52, %s53
      %p57 = pneg %p51
      %p58 = scmp.eq.s32.totalorder %s16, 1
      %p59 = por %p57, %p58
      %p60 = scmp.ne.s32.totalorder %s52, %s55
      %p61 = scmp.eq.s32.totalorder %s16, 0
      %p62 = por %p60, %p61
      %p63 = scmp.ne.s32.totalorder %s52, %s55
      %p64 = scmp.eq.s32.totalorder %s21, 1
      %p65 = por %p63, %p64
      %p66 = scmp.ne.s32.totalorder %s55, %s56
      %p67 = scmp.eq.s32.totalorder %s21, 0
      %p68 = por %p66, %p67
      %p69 = scmp.ne.s32.totalorder %s55, %s56
      %p70 = scmp.eq.s32.totalorder %s22, 1
      %p71 = por %p69, %p70
      %p73 = scmp.ne.s32.totalorder %s56, %s72
      %p74 = scmp.eq.s32.totalorder %s22, 0
      %p75 = por %p73, %p74
      %s76 = ssub.s32 %s16, %s23
      %p77 = scmp.eq.s32.totalorder %s76, 0
      %s79 = sadd.s32 %s78, 1
      %s80 = scalar_select %p77, %s78, %s79
      %p83 = pneg %p77
      %p84 = scmp.eq.s32.totalorder %s16, 1
      %p85 = por %p83, %p84
      %p86 = scmp.ne.s32.totalorder %s78, %s81
      %p87 = scmp.eq.s32.totalorder %s16, 0
      %p88 = por %p86, %p87
      %p89 = scmp.ne.s32.totalorder %s78, %s81
      %p90 = scmp.eq.s32.totalorder %s21, 1
      %p91 = por %p89, %p90
      %p92 = scmp.ne.s32.totalorder %s81, %s82
      %p93 = scmp.eq.s32.totalorder %s21, 0
      %p94 = por %p92, %p93
      %p95 = scmp.ne.s32.totalorder %s81, %s82
      %p96 = scmp.eq.s32.totalorder %s22, 1
      %p97 = por %p95, %p96
      %p99 = scmp.ne.s32.totalorder %s82, %s98
      %p100 = scmp.eq.s32.totalorder %s22, 0
      %p101 = por %p99, %p100
      %s103 = sadd.s32 %s102, 1
      %p106 = scmp.eq.s32.totalorder %s16, 1
      %p107 = scmp.ne.s32.totalorder %s102, %s104
      %p108 = scmp.eq.s32.totalorder %s16, 0
      %p109 = por %p107, %p108
      %p110 = scmp.ne.s32.totalorder %s102, %s104
      %p111 = scmp.eq.s32.totalorder %s21, 1
      %p112 = por %p110, %p111
      %p113 = scmp.ne.s32.totalorder %s104, %s105
      %p114 = scmp.eq.s32.totalorder %s21, 0
      %p115 = por %p113, %p114
      %p116 = scmp.ne.s32.totalorder %s104, %s105
      %p117 = scmp.eq.s32.totalorder %s22, 1
      %p118 = por %p116, %p117
      %p120 = scmp.ne.s32.totalorder %s105, %s119
      %p121 = scmp.eq.s32.totalorder %s22, 0
      %p122 = por %p120, %p121
      %s123 = ssub.s32 %s16, %s23
      %p124 = scmp.eq.s32.totalorder %s123, 0
      %s126 = sadd.s32 %s125, 1
      %s127 = scalar_select %p124, %s125, %s126
      %p130 = pneg %p124
      %p131 = scmp.eq.s32.totalorder %s16, 1
      %p132 = por %p130, %p131
      %p133 = scmp.ne.s32.totalorder %s125, %s128
      %p134 = scmp.eq.s32.totalorder %s16, 0
      %p135 = por %p133, %p134
      %p136 = scmp.ne.s32.totalorder %s125, %s128
      %p137 = scmp.eq.s32.totalorder %s21, 1
      %p138 = por %p136, %p137
      %p139 = scmp.ne.s32.totalorder %s128, %s129
      %p140 = scmp.eq.s32.totalorder %s21, 0
      %p141 = por %p139, %p140
      %p142 = scmp.ne.s32.totalorder %s128, %s129
      %p143 = scmp.eq.s32.totalorder %s22, 1
      %p144 = por %p142, %p143
      %p146 = scmp.ne.s32.totalorder %s129, %s145
      %p147 = scmp.eq.s32.totalorder %s22, 0
      %p148 = por %p146, %p147
      %p149 = scmp.le.s32.totalorder 1, %s16
      %p150 = scmp.lt.s32.totalorder %s16, 3
      %p151 = pnand %p149, %p150
      %p152 = pneg %p151
      // Predicated region
      $region9: #{tpu_custom_call.1} parent=5 // pred_check
        _
      $region10: #{tpu_custom_call.1} parent=5 // pred_check_branch
        %154 = sbr.rel (%p151) target = $region12
      $region11: #{tpu_custom_call.1} parent=5 // pred_region
        %s155 = ssub.s32 %s16, 1
        // Predicated region
        $region13: #{tpu_custom_call.1} parent=11 // pred_check
          %p156 = pneg %p115
        $region14: #{tpu_custom_call.1} parent=11 // pred_check_branch
          %158 = sbr.rel (%p156) target = $region16
        $region15: #{tpu_custom_call.1} parent=11 // pred_region
          _
        $region16: #{tpu_custom_call.1} parent=11 // pred_fallthru
          _
      $region12: #{tpu_custom_call.1} parent=5 // pred_fallthru
        _
      %p159 = scmp.lt.s32.totalorder %s16, 2
      // Predicated region
      $region17: #{tpu_custom_call.1} parent=5 // pred_check
        %p160 = pneg %p159
      $region18: #{tpu_custom_call.1} parent=5 // pred_check_branch
        %162 = sbr.rel (%p160) target = $region20
      $region19: #{tpu_custom_call.1} parent=5 // pred_region
        // Predicated region
        $region21: #{tpu_custom_call.1} parent=19 // pred_check
          %p163 = pneg %p36
        $region22: #{tpu_custom_call.1} parent=19 // pred_check_branch
          %165 = sbr.rel (%p163) target = $region24
        $region23: #{tpu_custom_call.1} parent=19 // pred_region
          %s166 = smul.u32 4, %s16
          %p167 = scmp.lt.s32.totalorder %s166, 7
          %s168 = scalar_select %p167, %s166, 7
          %s169 = smul.addr %s168, 8
          %s170 = scalar_lea.vmem %s0, %s169
          %s171 = smul.u32 4, %s16
        $region24: #{tpu_custom_call.1} parent=19 // pred_fallthru
          _
        // Predicated region
        $region25: #{tpu_custom_call.1} parent=19 // pred_check
          %p172 = pneg %p62
        $region26: #{tpu_custom_call.1} parent=19 // pred_check_branch
          %174 = sbr.rel (%p172) target = $region28
        $region27: #{tpu_custom_call.1} parent=19 // pred_region
          %s175 = smul.u32 4, %s16
          %p176 = scmp.lt.s32.totalorder %s175, 7
          %s177 = scalar_select %p176, %s175, 7
          %s178 = smul.addr %s177, 8
          %s179 = scalar_lea.vmem %s1, %s178
          %s180 = smul.u32 4, %s16
        $region28: #{tpu_custom_call.1} parent=19 // pred_fallthru
          _
        // Predicated region
        $region29: #{tpu_custom_call.1} parent=19 // pred_check
          %p181 = pneg %p88
        $region30: #{tpu_custom_call.1} parent=19 // pred_check_branch
          %183 = sbr.rel (%p181) target = $region32
        $region31: #{tpu_custom_call.1} parent=19 // pred_region
          %s184 = sand.u32 %s78, 1
          %s185 = scalar_lea.sflag [#allocation3], %s184
          %s186 = sand.u32 %s78, 1
          %s187 = smul.addr %s186, 8
          %s188 = scalar_lea.vmem [#allocation2], %s187
          %s189 = smul.u32 4, %s16
          %191 = vsyncadd %s185, 0
          %s192 = smul.addr %s189, 2
          %s193 = scalar_lea.hbm %s2, %s192
          %s194 = sshll.u32 %s193, 4
          %s195 = int_to_ptr.hbm [resolvable:$true] %s194
          %s196 = sshll.u32 %s188, 4
          %s197 = int_to_ptr.vmem [resolvable:$true] %s196
          %202 = dma.hbm_to_vmem [thread:$0]  %s195, 128, %s197, %s185, 32, 32, 2
        $region32: #{tpu_custom_call.1} parent=19 // pred_fallthru
          _
      $region20: #{tpu_custom_call.1} parent=5 // pred_fallthru
        _
      %p203 = scmp.le.s32.totalorder 1, %s16
      %p204 = scmp.lt.s32.totalorder %s16, 3
      %p205 = pnand %p203, %p204
      %p206 = pneg %p205
      // Predicated region
      $region33: #{tpu_custom_call.1} parent=5 // pred_check
        _
      $region34: #{tpu_custom_call.1} parent=5 // pred_check_branch
        %208 = sbr.rel (%p205) target = $region36
      $region35: #{tpu_custom_call.1} parent=5 // pred_region
        %s209 = ssub.s32 %s16, 1
        %s210 = sand.u32 %s81, 1
        %s211 = scalar_lea.sflag [#allocation3], %s210
        %s212 = sand.u32 %s81, 1
        %s213 = smul.addr %s212, 8
        %s214 = scalar_lea.vmem [#allocation2], %s213
        // Predicated region
        $region37: #{tpu_custom_call.1} parent=35 // pred_check
          %p215 = pneg %p94
        $region38: #{tpu_custom_call.1} parent=35 // pred_check_branch
          %217 = sbr.rel (%p215) target = $region40
        $region39: #{tpu_custom_call.1} parent=35 // pred_region
          %219 = dma.done %s211, 128
        $region40: #{tpu_custom_call.1} parent=35 // pred_fallthru
          _
        %s220 = smul.u32 4, %s21
        %p221 = scmp.lt.s32.totalorder %s220, 7
        %s222 = scalar_select %p221, %s220, 7
        %s223 = smul.addr %s222, 8
        %s224 = scalar_lea.vmem %s0, %s223
        %p225 = pneg %p42
        %p226 = pneg %p39
        %s227 = smul.u32 4, %s21
        %p228 = scmp.lt.s32.totalorder %s227, 7
        %s229 = scalar_select %p228, %s227, 7
        %s230 = smul.addr %s229, 8
        %s231 = scalar_lea.vmem %s1, %s230
        %p232 = pneg %p68
        %p233 = pneg %p65
        %s234 = sand.u32 %s81, 1
        %s235 = scalar_lea.sflag [#allocation3], %s234
        %s236 = sand.u32 %s81, 1
        %s237 = smul.addr %s236, 8
        %s238 = scalar_lea.vmem [#allocation2], %s237
        %p239 = pneg %p94
        %p240 = pneg %p91
        %p241 = pneg %p115
        %p242 = pneg %p112
        %p243 = pneg %p141
        %p244 = pneg %p138
        %s245 = sand.u32 %s128, 1
        %s246 = scalar_lea.sflag [#allocation4], %s245
        %s247 = sand.u32 %s128, 1
        %s248 = smul.addr %s247, 128
        %s249 = scalar_lea.vmem [#allocation5], %s248
        %s250 = smul.u32 4, %s21
        %p251 = scmp.lt.s32.totalorder %s250, 7
        %s252 = scalar_select %p251, %s250, 7
        %s253 = smul.addr %s252, 8
        %s254 = scalar_lea.vmem %s0, %s253
        %s255 = smul.u32 4, %s21
        %s256 = smul.u32 4, %s21
        %p257 = scmp.lt.s32.totalorder %s256, 7
        %s258 = scalar_select %p257, %s256, 7
        %s259 = smul.addr %s258, 8
        %s260 = scalar_lea.vmem %s1, %s259
        %s261 = smul.u32 4, %s21
        %s262 = smul.u32 4, %s21
        %s263 = smul.u32 4, %s21
        %v264 = vld [vmem:[%s254] sm:$0xff]
        %v265 = vld [vmem:[%s254 + $0x8] sm:$0xff]
        %v266 = vld [vmem:[%s254 + $0x10] sm:$0xff]
        %v267 = vld [vmem:[%s254 + $0x18] sm:$0xff]
        %v268 = vld [vmem:[%s260] sm:$0xff]
        %v269 = vld [vmem:[%s260 + $0x8] sm:$0xff]
        %v270 = vld [vmem:[%s260 + $0x10] sm:$0xff]
        %v271 = vld [vmem:[%s260 + $0x18] sm:$0xff]
        %v272 = vld [vmem:[%s214] sm:$0x3]
        %v273 = vld [vmem:[%s214 + $0x2] sm:$0x3]
        %v274 = vld [vmem:[%s214 + $0x4] sm:$0x3]
        %v275 = vld [vmem:[%s214 + $0x6] sm:$0x3]
        %v276 = vld [vmem:[%s3] sm:$0xff]
        %v277 = vld [vmem:[%s3 + $0x8] sm:$0xff]
        %v278 = vld [vmem:[%s3 + $0x10] sm:$0xff]
        %v279 = vld [vmem:[%s3 + $0x18] sm:$0xff]
        %vm280 = vcmask 261120
        %v282 = vsel %vm280, %v264, 0
        %v285 = vsel %vm280, %v265, 0
        %v288 = vsel %vm280, %v266, 0
        %v291 = vsel %vm280, %v267, 0
        %293 = vmatpush.msra.mxu0 0.0
        %294 = vmatpush.msra.mxu0 0.0
        %295 = vmatpush.msra.mxu0 0.0
        %296 = vmatpush.msra.mxu0 0.0
        %297 = vmatpush.msra.mxu0 0.0
        %298 = vmatpush.msra.mxu0 0.0
        %299 = vmatpush.msra.mxu0 0.0
        %300 = vmatpush.msra.mxu0 0.0
        %301 = vmatpush.msra.mxu0 0.0
        %302 = vmatpush.msra.mxu0 0.0
        %303 = vmatpush.msra.mxu0 0.0
        %304 = vmatpush.msra.mxu0 0.0
        %305 = vmatpush.msra.mxu0 %v279
        %306 = vmatpush.msra.mxu0 %v278
        %307 = vmatpush.msra.mxu0 %v277
        %308 = vmatpush.msra.mxu0 %v276
        %309 = vmatmul.f32.gmra.mxu0 %v282
        %v310 = vpop.f32.mrf.mxu0
        %v311 = vadd.f32 0.0, %v310
        %312 = vmatmul.f32.gmra.mxu0 %v285
        %v313 = vpop.f32.mrf.mxu0
        %v314 = vadd.f32 0.0, %v313
        %315 = vmatmul.f32.gmra.mxu0 %v288
        %v316 = vpop.f32.mrf.mxu0
        %v317 = vadd.f32 0.0, %v316
        %318 = vmatmul.f32.gmra.mxu0 %v291
        %v319 = vpop.f32.mrf.mxu0
        %v320 = vadd.f32 0.0, %v319
        %321 = vdwg.mxu0
        %vm322 = vcmask 23552
        %v324 = vsel %vm322, %v268, 0
        %326 = vmatpush.xpose.msra.mxu0 0.0
        %327 = vmatpush.xpose.msra.mxu0 0.0
        %328 = vmatpush.xpose.msra.mxu0 0.0
        %329 = vmatpush.xpose.msra.mxu0 0.0
        %330 = vmatpush.xpose.msra.mxu0 0.0
        %331 = vmatpush.xpose.msra.mxu0 0.0
        %332 = vmatpush.xpose.msra.mxu0 0.0
        %333 = vmatpush.xpose.msra.mxu0 0.0
        %334 = vmatpush.xpose.msra.mxu0 0.0
        %335 = vmatpush.xpose.msra.mxu0 0.0
        %336 = vmatpush.xpose.msra.mxu0 0.0
        %337 = vmatpush.xpose.msra.mxu0 0.0
        %338 = vmatpush.xpose.msra.mxu0 0.0
        %339 = vmatpush.xpose.msra.mxu0 0.0
        %340 = vmatpush.xpose.msra.mxu0 0.0
        %341 = vmatpush.xpose.msra.mxu0 %v324
        %342 = vmatmul.f32.gmra.mxu0 %v324
        %v343 = vpop.f32.mrf.mxu0
        %v344 = vadd.f32 0.0, %v343
        %345 = vdwg.mxu0
        %v347 = vsel %vm322, %v269, 0
        %349 = vmatpush.xpose.msra.mxu0 0.0
        %350 = vmatpush.xpose.msra.mxu0 0.0
        %351 = vmatpush.xpose.msra.mxu0 0.0
        %352 = vmatpush.xpose.msra.mxu0 0.0
        %353 = vmatpush.xpose.msra.mxu0 0.0
        %354 = vmatpush.xpose.msra.mxu0 0.0
        %355 = vmatpush.xpose.msra.mxu0 0.0
        %356 = vmatpush.xpose.msra.mxu0 0.0
        %357 = vmatpush.xpose.msra.mxu0 0.0
        %358 = vmatpush.xpose.msra.mxu0 0.0
        %359 = vmatpush.xpose.msra.mxu0 0.0
        %360 = vmatpush.xpose.msra.mxu0 0.0
        %361 = vmatpush.xpose.msra.mxu0 0.0
        %362 = vmatpush.xpose.msra.mxu0 0.0
        %363 = vmatpush.xpose.msra.mxu0 0.0
        %364 = vmatpush.xpose.msra.mxu0 %v347
        %365 = vmatmul.f32.gmra.mxu0 %v347
        %v366 = vpop.f32.mrf.mxu0
        %v367 = vadd.f32 0.0, %v366
        %368 = vdwg.mxu0
        %v370 = vsel %vm322, %v270, 0
        %372 = vmatpush.xpose.msra.mxu0 0.0
        %373 = vmatpush.xpose.msra.mxu0 0.0
        %374 = vmatpush.xpose.msra.mxu0 0.0
        %375 = vmatpush.xpose.msra.mxu0 0.0
        %376 = vmatpush.xpose.msra.mxu0 0.0
        %377 = vmatpush.xpose.msra.mxu0 0.0
        %378 = vmatpush.xpose.msra.mxu0 0.0
        %379 = vmatpush.xpose.msra.mxu0 0.0
        %380 = vmatpush.xpose.msra.mxu0 0.0
        %381 = vmatpush.xpose.msra.mxu0 0.0
        %382 = vmatpush.xpose.msra.mxu0 0.0
        %383 = vmatpush.xpose.msra.mxu0 0.0
        %384 = vmatpush.xpose.msra.mxu0 0.0
        %385 = vmatpush.xpose.msra.mxu0 0.0
        %386 = vmatpush.xpose.msra.mxu0 0.0
        %387 = vmatpush.xpose.msra.mxu0 %v370
        %388 = vmatmul.f32.gmra.mxu0 %v370
        %v389 = vpop.f32.mrf.mxu0
        %v390 = vadd.f32 0.0, %v389
        %391 = vdwg.mxu0
        %v393 = vsel %vm322, %v271, 0
        %395 = vmatpush.xpose.msra.mxu0 0.0
        %396 = vmatpush.xpose.msra.mxu0 0.0
        %397 = vmatpush.xpose.msra.mxu0 0.0
        %398 = vmatpush.xpose.msra.mxu0 0.0
        %399 = vmatpush.xpose.msra.mxu0 0.0
        %400 = vmatpush.xpose.msra.mxu0 0.0
        %401 = vmatpush.xpose.msra.mxu0 0.0
        %402 = vmatpush.xpose.msra.mxu0 0.0
        %403 = vmatpush.xpose.msra.mxu0 0.0
        %404 = vmatpush.xpose.msra.mxu0 0.0
        %405 = vmatpush.xpose.msra.mxu0 0.0
        %406 = vmatpush.xpose.msra.mxu0 0.0
        %407 = vmatpush.xpose.msra.mxu0 0.0
        %408 = vmatpush.xpose.msra.mxu0 0.0
        %409 = vmatpush.xpose.msra.mxu0 0.0
        %410 = vmatpush.xpose.msra.mxu0 %v393
        %411 = vmatmul.f32.gmra.mxu0 %v393
        %v412 = vpop.f32.mrf.mxu0
        %v413 = vadd.f32 0.0, %v412
        %414 = vdwg.mxu0
        %vm415 = vcmp.gt.f32.partialorder %v268, 0.0
        %vm416 = vcmp.gt.f32.partialorder %v269, 0.0
        %vm417 = vcmp.gt.f32.partialorder %v270, 0.0
        %vm418 = vcmp.gt.f32.partialorder %v271, 0.0
        %vm419 = vcmp.gt.f32.partialorder %v272, 0.0
        %vm420 = vcmp.gt.f32.partialorder %v273, 0.0
        %vm421 = vcmp.gt.f32.partialorder %v274, 0.0
        %vm422 = vcmp.gt.f32.partialorder %v275, 0.0
        %v423 = vsel %vm415, 1, 0
        %v424 = vsel %vm416, 1, 0
        %v425 = vsel %vm417, 1, 0
        %v426 = vsel %vm418, 1, 0
        %427 = vset.pattern.permute.xlu0 3
        %428 = vperm.xlu0 %427, %v423
        %v429 = vpop.permute.xlu0 %428
        %430 = vset.pattern.permute.xlu0 3
        %431 = vperm.xlu0 %430, %v424
        %v432 = vpop.permute.xlu0 %431
        %433 = vset.pattern.permute.xlu0 3
        %434 = vperm.xlu0 %433, %v425
        %v435 = vpop.permute.xlu0 %434
        %436 = vset.pattern.permute.xlu0 3
        %437 = vperm.xlu0 %436, %v426
        %v438 = vpop.permute.xlu0 %437
        %vm439 = vcmp.eq.s32.totalorder %v429, 1
        %vm440 = vcmp.eq.s32.totalorder %v432, 1
        %vm441 = vcmp.eq.s32.totalorder %v435, 1
        %vm442 = vcmp.eq.s32.totalorder %v438, 1
        %v443 = vsel %vm419, 1, 0
        %v444 = vsel %vm420, 1, 0
        %v445 = vsel %vm421, 1, 0
        %v446 = vsel %vm422, 1, 0
        %v447 = vperm.slane %v443, 0
        %v448 = vperm.slane %v444, 0
        %v449 = vperm.slane %v445, 0
        %v450 = vperm.slane %v446, 0
        %vm451 = vcmp.eq.s32.totalorder %v447, 1
        %vm452 = vcmp.eq.s32.totalorder %v448, 1
        %vm453 = vcmp.eq.s32.totalorder %v449, 1
        %vm454 = vcmp.eq.s32.totalorder %v450, 1
        %vm455 = vmand %vm439, %vm451
        %vm456 = vmand %vm440, %vm452
        %vm457 = vmand %vm441, %vm453
        %vm458 = vmand %vm442, %vm454
        %459 = vset.pattern.permute.xlu0 4
        %460 = vperm.xlu0 %459, %v268
        %v461 = vpop.permute.xlu0 %460
        %463 = vset.pattern.permute.xlu0 4
        %464 = vperm.xlu0 %463, %v269
        %v465 = vpop.permute.xlu0 %464
        %467 = vset.pattern.permute.xlu0 4
        %468 = vperm.xlu0 %467, %v270
        %v469 = vpop.permute.xlu0 %468
        %471 = vset.pattern.permute.xlu0 4
        %472 = vperm.xlu0 %471, %v271
        %v473 = vpop.permute.xlu0 %472
        %v475 = vperm.slane %v272, 1
        %v476 = vperm.slane %v273, 1
        %v477 = vperm.slane %v274, 1
        %v478 = vperm.slane %v275, 1
        %v479 = vmul.f32 %v461, %v475
        %v480 = vmul.f32 %v465, %v476
        %v481 = vmul.f32 %v469, %v477
        %v482 = vmul.f32 %v473, %v478
        %v483 = vsel %vm455, %v479, 0.0
        %v484 = vsel %vm456, %v480, 0.0
        %v485 = vsel %vm457, %v481, 0.0
        %v486 = vsel %vm458, %v482, 0.0
        %v487 = vmul.f32 %v344, 0.57735026
        %v488 = vmul.f32 %v367, 0.57735026
        %v489 = vmul.f32 %v390, 0.57735026
        %v490 = vmul.f32 %v413, 0.57735026
        %v491 = vmul.f32 %v483, %v487
        %v492 = vmul.f32 %v484, %v488
        %v493 = vmul.f32 %v485, %v489
        %v494 = vmul.f32 %v486, %v490
        %496 = vrot.lane.b32.xlu0 %v311, 64
        %v497 = vpop.permute.xlu0 %496
        %vm498 = vcmask 130048
        %v499 = vsel %vm498, %v311, 0
        %v501 = vsel %vm498, %v497, 0
        %503 = vmatpush.xpose.msra.mxu0 0.0
        %504 = vmatpush.xpose.msra.mxu0 0.0
        %505 = vmatpush.xpose.msra.mxu0 0.0
        %506 = vmatpush.xpose.msra.mxu0 0.0
        %507 = vmatpush.xpose.msra.mxu0 0.0
        %508 = vmatpush.xpose.msra.mxu0 0.0
        %509 = vmatpush.xpose.msra.mxu0 0.0
        %510 = vmatpush.xpose.msra.mxu0 0.0
        %511 = vmatpush.xpose.msra.mxu0 0.0
        %512 = vmatpush.xpose.msra.mxu0 0.0
        %513 = vmatpush.xpose.msra.mxu0 0.0
        %514 = vmatpush.xpose.msra.mxu0 0.0
        %515 = vmatpush.xpose.msra.mxu0 0.0
        %516 = vmatpush.xpose.msra.mxu0 0.0
        %517 = vmatpush.xpose.msra.mxu0 0.0
        %518 = vmatpush.xpose.msra.mxu0 %v501
        %519 = vmatmul.f32.gmra.mxu0 %v499
        %v520 = vpop.f32.mrf.mxu0
        %v521 = vadd.f32 20.0, %v520
        %522 = vdwg.mxu0
        %524 = vrot.lane.b32.xlu0 %v314, 64
        %v525 = vpop.permute.xlu0 %524
        %v526 = vsel %vm498, %v314, 0
        %v528 = vsel %vm498, %v525, 0
        %530 = vmatpush.xpose.msra.mxu0 0.0
        %531 = vmatpush.xpose.msra.mxu0 0.0
        %532 = vmatpush.xpose.msra.mxu0 0.0
        %533 = vmatpush.xpose.msra.mxu0 0.0
        %534 = vmatpush.xpose.msra.mxu0 0.0
        %535 = vmatpush.xpose.msra.mxu0 0.0
        %536 = vmatpush.xpose.msra.mxu0 0.0
        %537 = vmatpush.xpose.msra.mxu0 0.0
        %538 = vmatpush.xpose.msra.mxu0 0.0
        %539 = vmatpush.xpose.msra.mxu0 0.0
        %540 = vmatpush.xpose.msra.mxu0 0.0
        %541 = vmatpush.xpose.msra.mxu0 0.0
        %542 = vmatpush.xpose.msra.mxu0 0.0
        %543 = vmatpush.xpose.msra.mxu0 0.0
        %544 = vmatpush.xpose.msra.mxu0 0.0
        %545 = vmatpush.xpose.msra.mxu0 %v528
        %546 = vmatmul.f32.gmra.mxu0 %v526
        %v547 = vpop.f32.mrf.mxu0
        %v548 = vadd.f32 20.0, %v547
        %549 = vdwg.mxu0
        %551 = vrot.lane.b32.xlu0 %v317, 64
        %v552 = vpop.permute.xlu0 %551
        %v553 = vsel %vm498, %v317, 0
        %v555 = vsel %vm498, %v552, 0
        %557 = vmatpush.xpose.msra.mxu0 0.0
        %558 = vmatpush.xpose.msra.mxu0 0.0
        %559 = vmatpush.xpose.msra.mxu0 0.0
        %560 = vmatpush.xpose.msra.mxu0 0.0
        %561 = vmatpush.xpose.msra.mxu0 0.0
        %562 = vmatpush.xpose.msra.mxu0 0.0
        %563 = vmatpush.xpose.msra.mxu0 0.0
        %564 = vmatpush.xpose.msra.mxu0 0.0
        %565 = vmatpush.xpose.msra.mxu0 0.0
        %566 = vmatpush.xpose.msra.mxu0 0.0
        %567 = vmatpush.xpose.msra.mxu0 0.0
        %568 = vmatpush.xpose.msra.mxu0 0.0
        %569 = vmatpush.xpose.msra.mxu0 0.0
        %570 = vmatpush.xpose.msra.mxu0 0.0
        %571 = vmatpush.xpose.msra.mxu0 0.0
        %572 = vmatpush.xpose.msra.mxu0 %v555
        %573 = vmatmul.f32.gmra.mxu0 %v553
        %v574 = vpop.f32.mrf.mxu0
        %v575 = vadd.f32 20.0, %v574
        %576 = vdwg.mxu0
        %578 = vrot.lane.b32.xlu0 %v320, 64
        %v579 = vpop.permute.xlu0 %578
        %v580 = vsel %vm498, %v320, 0
        %v582 = vsel %vm498, %v579, 0
        %584 = vmatpush.xpose.msra.mxu0 0.0
        %585 = vmatpush.xpose.msra.mxu0 0.0
        %586 = vmatpush.xpose.msra.mxu0 0.0
        %587 = vmatpush.xpose.msra.mxu0 0.0
        %588 = vmatpush.xpose.msra.mxu0 0.0
        %589 = vmatpush.xpose.msra.mxu0 0.0
        %590 = vmatpush.xpose.msra.mxu0 0.0
        %591 = vmatpush.xpose.msra.mxu0 0.0
        %592 = vmatpush.xpose.msra.mxu0 0.0
        %593 = vmatpush.xpose.msra.mxu0 0.0
        %594 = vmatpush.xpose.msra.mxu0 0.0
        %595 = vmatpush.xpose.msra.mxu0 0.0
        %596 = vmatpush.xpose.msra.mxu0 0.0
        %597 = vmatpush.xpose.msra.mxu0 0.0
        %598 = vmatpush.xpose.msra.mxu0 0.0
        %599 = vmatpush.xpose.msra.mxu0 %v582
        %600 = vmatmul.f32.gmra.mxu0 %v580
        %v601 = vpop.f32.mrf.mxu0
        %v602 = vadd.f32 20.0, %v601
        %603 = vdwg.mxu0
        %v604 = vmul.f32 %v521, %v479
        %v605 = vmul.f32 %v548, %v480
        %v606 = vmul.f32 %v575, %v481
        %v607 = vmul.f32 %v602, %v482
        %v608 = vsub.f32 %v604, 20.0
        %v609 = vsub.f32 %v605, 20.0
        %v610 = vsub.f32 %v606, 20.0
        %v611 = vsub.f32 %v607, 20.0
        %vm612 = vcmask 64512
        %v613 = vsel %vm612, %v608, -inf
        %614 = vmax.xlane.f32.xlu0 %v613
        %v615 = vpop.xlane.xlu0 %614
        %v616 = vsel %vm612, %v609, -inf
        %617 = vmax.xlane.f32.xlu0 %v616
        %v618 = vpop.xlane.xlu0 %617
        %v619 = vsel %vm612, %v610, -inf
        %620 = vmax.xlane.f32.xlu0 %v619
        %v621 = vpop.xlane.xlu0 %620
        %v622 = vsel %vm612, %v611, -inf
        %623 = vmax.xlane.f32.xlu0 %v622
        %v624 = vpop.xlane.xlu0 %623
        %v625 = vsub.f32 %v608, %v615
        %v626 = vsub.f32 %v609, %v618
        %v627 = vsub.f32 %v610, %v621
        %v628 = vsub.f32 %v611, %v624
        %v629 = vmul.f32 %v625, 1.442695
        %v630 = vpow.pop %v629
        %v631 = vmul.f32 %v626, 1.442695
        %v632 = vpow.pop %v631
        %v633 = vmul.f32 %v627, 1.442695
        %v634 = vpow.pop %v633
        %v635 = vmul.f32 %v628, 1.442695
        %v636 = vpow.pop %v635
        %v637 = vsel %vm612, %v630, 0.0
        %638 = vadd.xlane.f32.xlu0 %v637
        %v639 = vpop.xlane.xlu0 %638
        %v640 = vsel %vm612, %v632, 0.0
        %641 = vadd.xlane.f32.xlu0 %v640
        %v642 = vpop.xlane.xlu0 %641
        %v643 = vsel %vm612, %v634, 0.0
        %644 = vadd.xlane.f32.xlu0 %v643
        %v645 = vpop.xlane.xlu0 %644
        %v646 = vsel %vm612, %v636, 0.0
        %647 = vadd.xlane.f32.xlu0 %v646
        %v648 = vpop.xlane.xlu0 %647
        %v649 = vrcp.pop %v639
        %v650 = vmul.f32 %v639, %v649
        %v651 = vsub.f32 1.0, %v650
        %v652 = vmul.f32 %v649, %v651
        %v653 = vadd.f32 %v649, %v652
        %vm654 = vweird.f32 %v639
        %vm655 = vweird.f32 %v649
        %vm656 = vmor %vm654, %vm655
        %v657 = vsel %vm656, %v649, %v653
        %v658 = vand.u32 2147483647, %v639
        %vm659 = vcmp.eq.f32.partialorder %v658, 8.507059e+37
        %v660 = vand.u32 %v639, 2147483648
        %v661 = vor.u32 1.1754944e-38, %v660
        %v662 = vsel %vm659, %v661, %v657
        %v663 = vmul.f32 1.0, %v662
        %v664 = vrcp.pop %v642
        %v665 = vmul.f32 %v642, %v664
        %v666 = vsub.f32 1.0, %v665
        %v667 = vmul.f32 %v664, %v666
        %v668 = vadd.f32 %v664, %v667
        %vm669 = vweird.f32 %v642
        %vm670 = vweird.f32 %v664
        %vm671 = vmor %vm669, %vm670
        %v672 = vsel %vm671, %v664, %v668
        %v673 = vand.u32 2147483647, %v642
        %vm674 = vcmp.eq.f32.partialorder %v673, 8.507059e+37
        %v675 = vand.u32 %v642, 2147483648
        %v676 = vor.u32 1.1754944e-38, %v675
        %v677 = vsel %vm674, %v676, %v672
        %v678 = vmul.f32 1.0, %v677
        %v679 = vrcp.pop %v645
        %v680 = vmul.f32 %v645, %v679
        %v681 = vsub.f32 1.0, %v680
        %v682 = vmul.f32 %v679, %v681
        %v683 = vadd.f32 %v679, %v682
        %vm684 = vweird.f32 %v645
        %vm685 = vweird.f32 %v679
        %vm686 = vmor %vm684, %vm685
        %v687 = vsel %vm686, %v679, %v683
        %v688 = vand.u32 2147483647, %v645
        %vm689 = vcmp.eq.f32.partialorder %v688, 8.507059e+37
        %v690 = vand.u32 %v645, 2147483648
        %v691 = vor.u32 1.1754944e-38, %v690
        %v692 = vsel %vm689, %v691, %v687
        %v693 = vmul.f32 1.0, %v692
        %v694 = vrcp.pop %v648
        %v695 = vmul.f32 %v648, %v694
        %v696 = vsub.f32 1.0, %v695
        %v697 = vmul.f32 %v694, %v696
        %v698 = vadd.f32 %v694, %v697
        %vm699 = vweird.f32 %v648
        %vm700 = vweird.f32 %v694
        %vm701 = vmor %vm699, %vm700
        %v702 = vsel %vm701, %v694, %v698
        %v703 = vand.u32 2147483647, %v648
        %vm704 = vcmp.eq.f32.partialorder %v703, 8.507059e+37
        %v705 = vand.u32 %v648, 2147483648
        %v706 = vor.u32 1.1754944e-38, %v705
        %v707 = vsel %vm704, %v706, %v702
        %v708 = vmul.f32 1.0, %v707
        %v709 = vmul.f32 %v630, %v663
        %v710 = vmul.f32 %v632, %v678
        %v711 = vmul.f32 %v634, %v693
        %v712 = vmul.f32 %v636, %v708
        %v713 = vmul.f32 %v709, %v491
        %v714 = vmul.f32 %v710, %v492
        %v715 = vmul.f32 %v711, %v493
        %v716 = vmul.f32 %v712, %v494
        %717 = vst.msk [vmem:[%s249] sm:$0xff] %vm612, %v713
        %718 = vst.msk [vmem:[%s249 + $0x20] sm:$0xff] %vm612, %v714
        %719 = vst.msk [vmem:[%s249 + $0x40] sm:$0xff] %vm612, %v715
        %720 = vst.msk [vmem:[%s249 + $0x60] sm:$0xff] %vm612, %v716
        %721 = vrot.lane.b32.xlu0 %v311, 112
        %v722 = vpop.permute.xlu0 %721
        %723 = vrot.lane.b32.xlu0 %v311, 48
        %v724 = vpop.permute.xlu0 %723
        %v725 = vsel %vm498, %v722, 0
        %v727 = vsel %vm498, %v724, 0
        %729 = vmatpush.xpose.msra.mxu0 0.0
        %730 = vmatpush.xpose.msra.mxu0 0.0
        %731 = vmatpush.xpose.msra.mxu0 0.0
        %732 = vmatpush.xpose.msra.mxu0 0.0
        %733 = vmatpush.xpose.msra.mxu0 0.0
        %734 = vmatpush.xpose.msra.mxu0 0.0
        %735 = vmatpush.xpose.msra.mxu0 0.0
        %736 = vmatpush.xpose.msra.mxu0 0.0
        %737 = vmatpush.xpose.msra.mxu0 0.0
        %738 = vmatpush.xpose.msra.mxu0 0.0
        %739 = vmatpush.xpose.msra.mxu0 0.0
        %740 = vmatpush.xpose.msra.mxu0 0.0
        %741 = vmatpush.xpose.msra.mxu0 0.0
        %742 = vmatpush.xpose.msra.mxu0 0.0
        %743 = vmatpush.xpose.msra.mxu0 0.0
        %744 = vmatpush.xpose.msra.mxu0 %v727
        %745 = vmatmul.f32.gmra.mxu0 %v725
        %v746 = vpop.f32.mrf.mxu0
        %v747 = vadd.f32 20.0, %v746
        %748 = vdwg.mxu0
        %749 = vrot.lane.b32.xlu0 %v314, 112
        %v750 = vpop.permute.xlu0 %749
        %751 = vrot.lane.b32.xlu0 %v314, 48
        %v752 = vpop.permute.xlu0 %751
        %v753 = vsel %vm498, %v750, 0
        %v755 = vsel %vm498, %v752, 0
        %757 = vmatpush.xpose.msra.mxu0 0.0
        %758 = vmatpush.xpose.msra.mxu0 0.0
        %759 = vmatpush.xpose.msra.mxu0 0.0
        %760 = vmatpush.xpose.msra.mxu0 0.0
        %761 = vmatpush.xpose.msra.mxu0 0.0
        %762 = vmatpush.xpose.msra.mxu0 0.0
        %763 = vmatpush.xpose.msra.mxu0 0.0
        %764 = vmatpush.xpose.msra.mxu0 0.0
        %765 = vmatpush.xpose.msra.mxu0 0.0
        %766 = vmatpush.xpose.msra.mxu0 0.0
        %767 = vmatpush.xpose.msra.mxu0 0.0
        %768 = vmatpush.xpose.msra.mxu0 0.0
        %769 = vmatpush.xpose.msra.mxu0 0.0
        %770 = vmatpush.xpose.msra.mxu0 0.0
        %771 = vmatpush.xpose.msra.mxu0 0.0
        %772 = vmatpush.xpose.msra.mxu0 %v755
        %773 = vmatmul.f32.gmra.mxu0 %v753
        %v774 = vpop.f32.mrf.mxu0
        %v775 = vadd.f32 20.0, %v774
        %776 = vdwg.mxu0
        %777 = vrot.lane.b32.xlu0 %v317, 112
        %v778 = vpop.permute.xlu0 %777
        %779 = vrot.lane.b32.xlu0 %v317, 48
        %v780 = vpop.permute.xlu0 %779
        %v781 = vsel %vm498, %v778, 0
        %v783 = vsel %vm498, %v780, 0
        %785 = vmatpush.xpose.msra.mxu0 0.0
        %786 = vmatpush.xpose.msra.mxu0 0.0
        %787 = vmatpush.xpose.msra.mxu0 0.0
        %788 = vmatpush.xpose.msra.mxu0 0.0
        %789 = vmatpush.xpose.msra.mxu0 0.0
        %790 = vmatpush.xpose.msra.mxu0 0.0
        %791 = vmatpush.xpose.msra.mxu0 0.0
        %792 = vmatpush.xpose.msra.mxu0 0.0
        %793 = vmatpush.xpose.msra.mxu0 0.0
        %794 = vmatpush.xpose.msra.mxu0 0.0
        %795 = vmatpush.xpose.msra.mxu0 0.0
        %796 = vmatpush.xpose.msra.mxu0 0.0
        %797 = vmatpush.xpose.msra.mxu0 0.0
        %798 = vmatpush.xpose.msra.mxu0 0.0
        %799 = vmatpush.xpose.msra.mxu0 0.0
        %800 = vmatpush.xpose.msra.mxu0 %v783
        %801 = vmatmul.f32.gmra.mxu0 %v781
        %v802 = vpop.f32.mrf.mxu0
        %v803 = vadd.f32 20.0, %v802
        %804 = vdwg.mxu0
        %805 = vrot.lane.b32.xlu0 %v320, 112
        %v806 = vpop.permute.xlu0 %805
        %807 = vrot.lane.b32.xlu0 %v320, 48
        %v808 = vpop.permute.xlu0 %807
        %v809 = vsel %vm498, %v806, 0
        %v811 = vsel %vm498, %v808, 0
        %813 = vmatpush.xpose.msra.mxu0 0.0
        %814 = vmatpush.xpose.msra.mxu0 0.0
        %815 = vmatpush.xpose.msra.mxu0 0.0
        %816 = vmatpush.xpose.msra.mxu0 0.0
        %817 = vmatpush.xpose.msra.mxu0 0.0
        %818 = vmatpush.xpose.msra.mxu0 0.0
        %819 = vmatpush.xpose.msra.mxu0 0.0
        %820 = vmatpush.xpose.msra.mxu0 0.0
        %821 = vmatpush.xpose.msra.mxu0 0.0
        %822 = vmatpush.xpose.msra.mxu0 0.0
        %823 = vmatpush.xpose.msra.mxu0 0.0
        %824 = vmatpush.xpose.msra.mxu0 0.0
        %825 = vmatpush.xpose.msra.mxu0 0.0
        %826 = vmatpush.xpose.msra.mxu0 0.0
        %827 = vmatpush.xpose.msra.mxu0 0.0
        %828 = vmatpush.xpose.msra.mxu0 %v811
        %829 = vmatmul.f32.gmra.mxu0 %v809
        %v830 = vpop.f32.mrf.mxu0
        %v831 = vadd.f32 20.0, %v830
        %832 = vdwg.mxu0
        %v833 = vmul.f32 %v747, %v479
        %v834 = vmul.f32 %v775, %v480
        %v835 = vmul.f32 %v803, %v481
        %v836 = vmul.f32 %v831, %v482
        %v837 = vsub.f32 %v833, 20.0
        %v838 = vsub.f32 %v834, 20.0
        %v839 = vsub.f32 %v835, 20.0
        %v840 = vsub.f32 %v836, 20.0
        %v841 = vsel %vm612, %v837, -inf
        %842 = vmax.xlane.f32.xlu0 %v841
        %v843 = vpop.xlane.xlu0 %842
        %v844 = vsel %vm612, %v838, -inf
        %845 = vmax.xlane.f32.xlu0 %v844
        %v846 = vpop.xlane.xlu0 %845
        %v847 = vsel %vm612, %v839, -inf
        %848 = vmax.xlane.f32.xlu0 %v847
        %v849 = vpop.xlane.xlu0 %848
        %v850 = vsel %vm612, %v840, -inf
        %851 = vmax.xlane.f32.xlu0 %v850
        %v852 = vpop.xlane.xlu0 %851
        %v853 = vsub.f32 %v837, %v843
        %v854 = vsub.f32 %v838, %v846
        %v855 = vsub.f32 %v839, %v849
        %v856 = vsub.f32 %v840, %v852
        %v857 = vmul.f32 %v853, 1.442695
        %v858 = vpow.pop %v857
        %v859 = vmul.f32 %v854, 1.442695
        %v860 = vpow.pop %v859
        %v861 = vmul.f32 %v855, 1.442695
        %v862 = vpow.pop %v861
        %v863 = vmul.f32 %v856, 1.442695
        %v864 = vpow.pop %v863
        %v865 = vsel %vm612, %v858, 0.0
        %866 = vadd.xlane.f32.xlu0 %v865
        %v867 = vpop.xlane.xlu0 %866
        %v868 = vsel %vm612, %v860, 0.0
        %869 = vadd.xlane.f32.xlu0 %v868
        %v870 = vpop.xlane.xlu0 %869
        %v871 = vsel %vm612, %v862, 0.0
        %872 = vadd.xlane.f32.xlu0 %v871
        %v873 = vpop.xlane.xlu0 %872
        %v874 = vsel %vm612, %v864, 0.0
        %875 = vadd.xlane.f32.xlu0 %v874
        %v876 = vpop.xlane.xlu0 %875
        %v877 = vrcp.pop %v867
        %v878 = vmul.f32 %v867, %v877
        %v879 = vsub.f32 1.0, %v878
        %v880 = vmul.f32 %v877, %v879
        %v881 = vadd.f32 %v877, %v880
        %vm882 = vweird.f32 %v867
        %vm883 = vweird.f32 %v877
        %vm884 = vmor %vm882, %vm883
        %v885 = vsel %vm884, %v877, %v881
        %v886 = vand.u32 2147483647, %v867
        %vm887 = vcmp.eq.f32.partialorder %v886, 8.507059e+37
        %v888 = vand.u32 %v867, 2147483648
        %v889 = vor.u32 1.1754944e-38, %v888
        %v890 = vsel %vm887, %v889, %v885
        %v891 = vmul.f32 1.0, %v890
        %v892 = vrcp.pop %v870
        %v893 = vmul.f32 %v870, %v892
        %v894 = vsub.f32 1.0, %v893
        %v895 = vmul.f32 %v892, %v894
        %v896 = vadd.f32 %v892, %v895
        %vm897 = vweird.f32 %v870
        %vm898 = vweird.f32 %v892
        %vm899 = vmor %vm897, %vm898
        %v900 = vsel %vm899, %v892, %v896
        %v901 = vand.u32 2147483647, %v870
        %vm902 = vcmp.eq.f32.partialorder %v901, 8.507059e+37
        %v903 = vand.u32 %v870, 2147483648
        %v904 = vor.u32 1.1754944e-38, %v903
        %v905 = vsel %vm902, %v904, %v900
        %v906 = vmul.f32 1.0, %v905
        %v907 = vrcp.pop %v873
        %v908 = vmul.f32 %v873, %v907
        %v909 = vsub.f32 1.0, %v908
        %v910 = vmul.f32 %v907, %v909
        %v911 = vadd.f32 %v907, %v910
        %vm912 = vweird.f32 %v873
        %vm913 = vweird.f32 %v907
        %vm914 = vmor %vm912, %vm913
        %v915 = vsel %vm914, %v907, %v911
        %v916 = vand.u32 2147483647, %v873
        %vm917 = vcmp.eq.f32.partialorder %v916, 8.507059e+37
        %v918 = vand.u32 %v873, 2147483648
        %v919 = vor.u32 1.1754944e-38, %v918
        %v920 = vsel %vm917, %v919, %v915
        %v921 = vmul.f32 1.0, %v920
        %v922 = vrcp.pop %v876
        %v923 = vmul.f32 %v876, %v922
        %v924 = vsub.f32 1.0, %v923
        %v925 = vmul.f32 %v922, %v924
        %v926 = vadd.f32 %v922, %v925
        %vm927 = vweird.f32 %v876
        %vm928 = vweird.f32 %v922
        %vm929 = vmor %vm927, %vm928
        %v930 = vsel %vm929, %v922, %v926
        %v931 = vand.u32 2147483647, %v876
        %vm932 = vcmp.eq.f32.partialorder %v931, 8.507059e+37
        %v933 = vand.u32 %v876, 2147483648
        %v934 = vor.u32 1.1754944e-38, %v933
        %v935 = vsel %vm932, %v934, %v930
        %v936 = vmul.f32 1.0, %v935
        %v937 = vmul.f32 %v858, %v891
        %v938 = vmul.f32 %v860, %v906
        %v939 = vmul.f32 %v862, %v921
        %v940 = vmul.f32 %v864, %v936
        %v941 = vmul.f32 %v937, %v491
        %v942 = vmul.f32 %v938, %v492
        %v943 = vmul.f32 %v939, %v493
        %v944 = vmul.f32 %v940, %v494
        %s945 = scalar_lea.vmem %s249, 8 [#allocation5]
        %946 = vst.msk [vmem:[%s945] sm:$0xff] %vm612, %v941
        %947 = vst.msk [vmem:[%s945 + $0x20] sm:$0xff] %vm612, %v942
        %948 = vst.msk [vmem:[%s945 + $0x40] sm:$0xff] %vm612, %v943
        %949 = vst.msk [vmem:[%s945 + $0x60] sm:$0xff] %vm612, %v944
        %950 = vrot.lane.b32.xlu0 %v311, 96
        %v951 = vpop.permute.xlu0 %950
        %952 = vrot.lane.b32.xlu0 %v311, 32
        %v953 = vpop.permute.xlu0 %952
        %v954 = vsel %vm498, %v951, 0
        %v956 = vsel %vm498, %v953, 0
        %958 = vmatpush.xpose.msra.mxu0 0.0
        %959 = vmatpush.xpose.msra.mxu0 0.0
        %960 = vmatpush.xpose.msra.mxu0 0.0
        %961 = vmatpush.xpose.msra.mxu0 0.0
        %962 = vmatpush.xpose.msra.mxu0 0.0
        %963 = vmatpush.xpose.msra.mxu0 0.0
        %964 = vmatpush.xpose.msra.mxu0 0.0
        %965 = vmatpush.xpose.msra.mxu0 0.0
        %966 = vmatpush.xpose.msra.mxu0 0.0
        %967 = vmatpush.xpose.msra.mxu0 0.0
        %968 = vmatpush.xpose.msra.mxu0 0.0
        %969 = vmatpush.xpose.msra.mxu0 0.0
        %970 = vmatpush.xpose.msra.mxu0 0.0
        %971 = vmatpush.xpose.msra.mxu0 0.0
        %972 = vmatpush.xpose.msra.mxu0 0.0
        %973 = vmatpush.xpose.msra.mxu0 %v956
        %974 = vmatmul.f32.gmra.mxu0 %v954
        %v975 = vpop.f32.mrf.mxu0
        %v976 = vadd.f32 20.0, %v975
        %977 = vdwg.mxu0
        %978 = vrot.lane.b32.xlu0 %v314, 96
        %v979 = vpop.permute.xlu0 %978
        %980 = vrot.lane.b32.xlu0 %v314, 32
        %v981 = vpop.permute.xlu0 %980
        %v982 = vsel %vm498, %v979, 0
        %v984 = vsel %vm498, %v981, 0
        %986 = vmatpush.xpose.msra.mxu0 0.0
        %987 = vmatpush.xpose.msra.mxu0 0.0
        %988 = vmatpush.xpose.msra.mxu0 0.0
        %989 = vmatpush.xpose.msra.mxu0 0.0
        %990 = vmatpush.xpose.msra.mxu0 0.0
        %991 = vmatpush.xpose.msra.mxu0 0.0
        %992 = vmatpush.xpose.msra.mxu0 0.0
        %993 = vmatpush.xpose.msra.mxu0 0.0
        %994 = vmatpush.xpose.msra.mxu0 0.0
        %995 = vmatpush.xpose.msra.mxu0 0.0
        %996 = vmatpush.xpose.msra.mxu0 0.0
        %997 = vmatpush.xpose.msra.mxu0 0.0
        %998 = vmatpush.xpose.msra.mxu0 0.0
        %999 = vmatpush.xpose.msra.mxu0 0.0
        %1000 = vmatpush.xpose.msra.mxu0 0.0
        %1001 = vmatpush.xpose.msra.mxu0 %v984
        %1002 = vmatmul.f32.gmra.mxu0 %v982
        %v1003 = vpop.f32.mrf.mxu0
        %v1004 = vadd.f32 20.0, %v1003
        %1005 = vdwg.mxu0
        %1006 = vrot.lane.b32.xlu0 %v317, 96
        %v1007 = vpop.permute.xlu0 %1006
        %1008 = vrot.lane.b32.xlu0 %v317, 32
        %v1009 = vpop.permute.xlu0 %1008
        %v1010 = vsel %vm498, %v1007, 0
        %v1012 = vsel %vm498, %v1009, 0
        %1014 = vmatpush.xpose.msra.mxu0 0.0
        %1015 = vmatpush.xpose.msra.mxu0 0.0
        %1016 = vmatpush.xpose.msra.mxu0 0.0
        %1017 = vmatpush.xpose.msra.mxu0 0.0
        %1018 = vmatpush.xpose.msra.mxu0 0.0
        %1019 = vmatpush.xpose.msra.mxu0 0.0
        %1020 = vmatpush.xpose.msra.mxu0 0.0
        %1021 = vmatpush.xpose.msra.mxu0 0.0
        %1022 = vmatpush.xpose.msra.mxu0 0.0
        %1023 = vmatpush.xpose.msra.mxu0 0.0
        %1024 = vmatpush.xpose.msra.mxu0 0.0
        %1025 = vmatpush.xpose.msra.mxu0 0.0
        %1026 = vmatpush.xpose.msra.mxu0 0.0
        %1027 = vmatpush.xpose.msra.mxu0 0.0
        %1028 = vmatpush.xpose.msra.mxu0 0.0
        %1029 = vmatpush.xpose.msra.mxu0 %v1012
        %1030 = vmatmul.f32.gmra.mxu0 %v1010
        %v1031 = vpop.f32.mrf.mxu0
        %v1032 = vadd.f32 20.0, %v1031
        %1033 = vdwg.mxu0
        %1034 = vrot.lane.b32.xlu0 %v320, 96
        %v1035 = vpop.permute.xlu0 %1034
        %1036 = vrot.lane.b32.xlu0 %v320, 32
        %v1037 = vpop.permute.xlu0 %1036
        %v1038 = vsel %vm498, %v1035, 0
        %v1040 = vsel %vm498, %v1037, 0
        %1042 = vmatpush.xpose.msra.mxu0 0.0
        %1043 = vmatpush.xpose.msra.mxu0 0.0
        %1044 = vmatpush.xpose.msra.mxu0 0.0
        %1045 = vmatpush.xpose.msra.mxu0 0.0
        %1046 = vmatpush.xpose.msra.mxu0 0.0
        %1047 = vmatpush.xpose.msra.mxu0 0.0
        %1048 = vmatpush.xpose.msra.mxu0 0.0
        %1049 = vmatpush.xpose.msra.mxu0 0.0
        %1050 = vmatpush.xpose.msra.mxu0 0.0
        %1051 = vmatpush.xpose.msra.mxu0 0.0
        %1052 = vmatpush.xpose.msra.mxu0 0.0
        %1053 = vmatpush.xpose.msra.mxu0 0.0
        %1054 = vmatpush.xpose.msra.mxu0 0.0
        %1055 = vmatpush.xpose.msra.mxu0 0.0
        %1056 = vmatpush.xpose.msra.mxu0 0.0
        %1057 = vmatpush.xpose.msra.mxu0 %v1040
        %1058 = vmatmul.f32.gmra.mxu0 %v1038
        %v1059 = vpop.f32.mrf.mxu0
        %v1060 = vadd.f32 20.0, %v1059
        %1061 = vdwg.mxu0
        %v1062 = vmul.f32 %v976, %v479
        %v1063 = vmul.f32 %v1004, %v480
        %v1064 = vmul.f32 %v1032, %v481
        %v1065 = vmul.f32 %v1060, %v482
        %v1066 = vsub.f32 %v1062, 20.0
        %v1067 = vsub.f32 %v1063, 20.0
        %v1068 = vsub.f32 %v1064, 20.0
        %v1069 = vsub.f32 %v1065, 20.0
        %v1070 = vsel %vm612, %v1066, -inf
        %1071 = vmax.xlane.f32.xlu0 %v1070
        %v1072 = vpop.xlane.xlu0 %1071
        %v1073 = vsel %vm612, %v1067, -inf
        %1074 = vmax.xlane.f32.xlu0 %v1073
        %v1075 = vpop.xlane.xlu0 %1074
        %v1076 = vsel %vm612, %v1068, -inf
        %1077 = vmax.xlane.f32.xlu0 %v1076
        %v1078 = vpop.xlane.xlu0 %1077
        %v1079 = vsel %vm612, %v1069, -inf
        %1080 = vmax.xlane.f32.xlu0 %v1079
        %v1081 = vpop.xlane.xlu0 %1080
        %v1082 = vsub.f32 %v1066, %v1072
        %v1083 = vsub.f32 %v1067, %v1075
        %v1084 = vsub.f32 %v1068, %v1078
        %v1085 = vsub.f32 %v1069, %v1081
        %v1086 = vmul.f32 %v1082, 1.442695
        %v1087 = vpow.pop %v1086
        %v1088 = vmul.f32 %v1083, 1.442695
        %v1089 = vpow.pop %v1088
        %v1090 = vmul.f32 %v1084, 1.442695
        %v1091 = vpow.pop %v1090
        %v1092 = vmul.f32 %v1085, 1.442695
        %v1093 = vpow.pop %v1092
        %v1094 = vsel %vm612, %v1087, 0.0
        %1095 = vadd.xlane.f32.xlu0 %v1094
        %v1096 = vpop.xlane.xlu0 %1095
        %v1097 = vsel %vm612, %v1089, 0.0
        %1098 = vadd.xlane.f32.xlu0 %v1097
        %v1099 = vpop.xlane.xlu0 %1098
        %v1100 = vsel %vm612, %v1091, 0.0
        %1101 = vadd.xlane.f32.xlu0 %v1100
        %v1102 = vpop.xlane.xlu0 %1101
        %v1103 = vsel %vm612, %v1093, 0.0
        %1104 = vadd.xlane.f32.xlu0 %v1103
        %v1105 = vpop.xlane.xlu0 %1104
        %v1106 = vrcp.pop %v1096
        %v1107 = vmul.f32 %v1096, %v1106
        %v1108 = vsub.f32 1.0, %v1107
        %v1109 = vmul.f32 %v1106, %v1108
        %v1110 = vadd.f32 %v1106, %v1109
        %vm1111 = vweird.f32 %v1096
        %vm1112 = vweird.f32 %v1106
        %vm1113 = vmor %vm1111, %vm1112
        %v1114 = vsel %vm1113, %v1106, %v1110
        %v1115 = vand.u32 2147483647, %v1096
        %vm1116 = vcmp.eq.f32.partialorder %v1115, 8.507059e+37
        %v1117 = vand.u32 %v1096, 2147483648
        %v1118 = vor.u32 1.1754944e-38, %v1117
        %v1119 = vsel %vm1116, %v1118, %v1114
        %v1120 = vmul.f32 1.0, %v1119
        %v1121 = vrcp.pop %v1099
        %v1122 = vmul.f32 %v1099, %v1121
        %v1123 = vsub.f32 1.0, %v1122
        %v1124 = vmul.f32 %v1121, %v1123
        %v1125 = vadd.f32 %v1121, %v1124
        %vm1126 = vweird.f32 %v1099
        %vm1127 = vweird.f32 %v1121
        %vm1128 = vmor %vm1126, %vm1127
        %v1129 = vsel %vm1128, %v1121, %v1125
        %v1130 = vand.u32 2147483647, %v1099
        %vm1131 = vcmp.eq.f32.partialorder %v1130, 8.507059e+37
        %v1132 = vand.u32 %v1099, 2147483648
        %v1133 = vor.u32 1.1754944e-38, %v1132
        %v1134 = vsel %vm1131, %v1133, %v1129
        %v1135 = vmul.f32 1.0, %v1134
        %v1136 = vrcp.pop %v1102
        %v1137 = vmul.f32 %v1102, %v1136
        %v1138 = vsub.f32 1.0, %v1137
        %v1139 = vmul.f32 %v1136, %v1138
        %v1140 = vadd.f32 %v1136, %v1139
        %vm1141 = vweird.f32 %v1102
        %vm1142 = vweird.f32 %v1136
        %vm1143 = vmor %vm1141, %vm1142
        %v1144 = vsel %vm1143, %v1136, %v1140
        %v1145 = vand.u32 2147483647, %v1102
        %vm1146 = vcmp.eq.f32.partialorder %v1145, 8.507059e+37
        %v1147 = vand.u32 %v1102, 2147483648
        %v1148 = vor.u32 1.1754944e-38, %v1147
        %v1149 = vsel %vm1146, %v1148, %v1144
        %v1150 = vmul.f32 1.0, %v1149
        %v1151 = vrcp.pop %v1105
        %v1152 = vmul.f32 %v1105, %v1151
        %v1153 = vsub.f32 1.0, %v1152
        %v1154 = vmul.f32 %v1151, %v1153
        %v1155 = vadd.f32 %v1151, %v1154
        %vm1156 = vweird.f32 %v1105
        %vm1157 = vweird.f32 %v1151
        %vm1158 = vmor %vm1156, %vm1157
        %v1159 = vsel %vm1158, %v1151, %v1155
        %v1160 = vand.u32 2147483647, %v1105
        %vm1161 = vcmp.eq.f32.partialorder %v1160, 8.507059e+37
        %v1162 = vand.u32 %v1105, 2147483648
        %v1163 = vor.u32 1.1754944e-38, %v1162
        %v1164 = vsel %vm1161, %v1163, %v1159
        %v1165 = vmul.f32 1.0, %v1164
        %v1166 = vmul.f32 %v1087, %v1120
        %v1167 = vmul.f32 %v1089, %v1135
        %v1168 = vmul.f32 %v1091, %v1150
        %v1169 = vmul.f32 %v1093, %v1165
        %v1170 = vmul.f32 %v1166, %v491
        %v1171 = vmul.f32 %v1167, %v492
        %v1172 = vmul.f32 %v1168, %v493
        %v1173 = vmul.f32 %v1169, %v494
        %s1174 = scalar_lea.vmem %s249, 16 [#allocation5]
        %1175 = vst.msk [vmem:[%s1174] sm:$0xff] %vm612, %v1170
        %1176 = vst.msk [vmem:[%s1174 + $0x20] sm:$0xff] %vm612, %v1171
        %1177 = vst.msk [vmem:[%s1174 + $0x40] sm:$0xff] %vm612, %v1172
        %1178 = vst.msk [vmem:[%s1174 + $0x60] sm:$0xff] %vm612, %v1173
        %1179 = vrot.lane.b32.xlu0 %v311, 80
        %v1180 = vpop.permute.xlu0 %1179
        %1181 = vrot.lane.b32.xlu0 %v311, 16
        %v1182 = vpop.permute.xlu0 %1181
        %v1183 = vsel %vm498, %v1180, 0
        %v1185 = vsel %vm498, %v1182, 0
        %1187 = vmatpush.xpose.msra.mxu0 0.0
        %1188 = vmatpush.xpose.msra.mxu0 0.0
        %1189 = vmatpush.xpose.msra.mxu0 0.0
        %1190 = vmatpush.xpose.msra.mxu0 0.0
        %1191 = vmatpush.xpose.msra.mxu0 0.0
        %1192 = vmatpush.xpose.msra.mxu0 0.0
        %1193 = vmatpush.xpose.msra.mxu0 0.0
        %1194 = vmatpush.xpose.msra.mxu0 0.0
        %1195 = vmatpush.xpose.msra.mxu0 0.0
        %1196 = vmatpush.xpose.msra.mxu0 0.0
        %1197 = vmatpush.xpose.msra.mxu0 0.0
        %1198 = vmatpush.xpose.msra.mxu0 0.0
        %1199 = vmatpush.xpose.msra.mxu0 0.0
        %1200 = vmatpush.xpose.msra.mxu0 0.0
        %1201 = vmatpush.xpose.msra.mxu0 0.0
        %1202 = vmatpush.xpose.msra.mxu0 %v1185
        %1203 = vmatmul.f32.gmra.mxu0 %v1183
        %v1204 = vpop.f32.mrf.mxu0
        %v1205 = vadd.f32 20.0, %v1204
        %1206 = vdwg.mxu0
        %1207 = vrot.lane.b32.xlu0 %v314, 80
        %v1208 = vpop.permute.xlu0 %1207
        %1209 = vrot.lane.b32.xlu0 %v314, 16
        %v1210 = vpop.permute.xlu0 %1209
        %v1211 = vsel %vm498, %v1208, 0
        %v1213 = vsel %vm498, %v1210, 0
        %1215 = vmatpush.xpose.msra.mxu0 0.0
        %1216 = vmatpush.xpose.msra.mxu0 0.0
        %1217 = vmatpush.xpose.msra.mxu0 0.0
        %1218 = vmatpush.xpose.msra.mxu0 0.0
        %1219 = vmatpush.xpose.msra.mxu0 0.0
        %1220 = vmatpush.xpose.msra.mxu0 0.0
        %1221 = vmatpush.xpose.msra.mxu0 0.0
        %1222 = vmatpush.xpose.msra.mxu0 0.0
        %1223 = vmatpush.xpose.msra.mxu0 0.0
        %1224 = vmatpush.xpose.msra.mxu0 0.0
        %1225 = vmatpush.xpose.msra.mxu0 0.0
        %1226 = vmatpush.xpose.msra.mxu0 0.0
        %1227 = vmatpush.xpose.msra.mxu0 0.0
        %1228 = vmatpush.xpose.msra.mxu0 0.0
        %1229 = vmatpush.xpose.msra.mxu0 0.0
        %1230 = vmatpush.xpose.msra.mxu0 %v1213
        %1231 = vmatmul.f32.gmra.mxu0 %v1211
        %v1232 = vpop.f32.mrf.mxu0
        %v1233 = vadd.f32 20.0, %v1232
        %1234 = vdwg.mxu0
        %1235 = vrot.lane.b32.xlu0 %v317, 80
        %v1236 = vpop.permute.xlu0 %1235
        %1237 = vrot.lane.b32.xlu0 %v317, 16
        %v1238 = vpop.permute.xlu0 %1237
        %v1239 = vsel %vm498, %v1236, 0
        %v1241 = vsel %vm498, %v1238, 0
        %1243 = vmatpush.xpose.msra.mxu0 0.0
        %1244 = vmatpush.xpose.msra.mxu0 0.0
        %1245 = vmatpush.xpose.msra.mxu0 0.0
        %1246 = vmatpush.xpose.msra.mxu0 0.0
        %1247 = vmatpush.xpose.msra.mxu0 0.0
        %1248 = vmatpush.xpose.msra.mxu0 0.0
        %1249 = vmatpush.xpose.msra.mxu0 0.0
        %1250 = vmatpush.xpose.msra.mxu0 0.0
        %1251 = vmatpush.xpose.msra.mxu0 0.0
        %1252 = vmatpush.xpose.msra.mxu0 0.0
        %1253 = vmatpush.xpose.msra.mxu0 0.0
        %1254 = vmatpush.xpose.msra.mxu0 0.0
        %1255 = vmatpush.xpose.msra.mxu0 0.0
        %1256 = vmatpush.xpose.msra.mxu0 0.0
        %1257 = vmatpush.xpose.msra.mxu0 0.0
        %1258 = vmatpush.xpose.msra.mxu0 %v1241
        %1259 = vmatmul.f32.gmra.mxu0 %v1239
        %v1260 = vpop.f32.mrf.mxu0
        %v1261 = vadd.f32 20.0, %v1260
        %1262 = vdwg.mxu0
        %1263 = vrot.lane.b32.xlu0 %v320, 80
        %v1264 = vpop.permute.xlu0 %1263
        %1265 = vrot.lane.b32.xlu0 %v320, 16
        %v1266 = vpop.permute.xlu0 %1265
        %v1267 = vsel %vm498, %v1264, 0
        %v1269 = vsel %vm498, %v1266, 0
        %1271 = vmatpush.xpose.msra.mxu0 0.0
        %1272 = vmatpush.xpose.msra.mxu0 0.0
        %1273 = vmatpush.xpose.msra.mxu0 0.0
        %1274 = vmatpush.xpose.msra.mxu0 0.0
        %1275 = vmatpush.xpose.msra.mxu0 0.0
        %1276 = vmatpush.xpose.msra.mxu0 0.0
        %1277 = vmatpush.xpose.msra.mxu0 0.0
        %1278 = vmatpush.xpose.msra.mxu0 0.0
        %1279 = vmatpush.xpose.msra.mxu0 0.0
        %1280 = vmatpush.xpose.msra.mxu0 0.0
        %1281 = vmatpush.xpose.msra.mxu0 0.0
        %1282 = vmatpush.xpose.msra.mxu0 0.0
        %1283 = vmatpush.xpose.msra.mxu0 0.0
        %1284 = vmatpush.xpose.msra.mxu0 0.0
        %1285 = vmatpush.xpose.msra.mxu0 0.0
        %1286 = vmatpush.xpose.msra.mxu0 %v1269
        %1287 = vmatmul.f32.gmra.mxu0 %v1267
        %v1288 = vpop.f32.mrf.mxu0
        %v1289 = vadd.f32 20.0, %v1288
        %1290 = vdwg.mxu0
        %v1291 = vmul.f32 %v1205, %v479
        %v1292 = vmul.f32 %v1233, %v480
        %v1293 = vmul.f32 %v1261, %v481
        %v1294 = vmul.f32 %v1289, %v482
        %v1295 = vsub.f32 %v1291, 20.0
        %v1296 = vsub.f32 %v1292, 20.0
        %v1297 = vsub.f32 %v1293, 20.0
        %v1298 = vsub.f32 %v1294, 20.0
        %v1299 = vsel %vm612, %v1295, -inf
        %1300 = vmax.xlane.f32.xlu0 %v1299
        %v1301 = vpop.xlane.xlu0 %1300
        %v1302 = vsel %vm612, %v1296, -inf
        %1303 = vmax.xlane.f32.xlu0 %v1302
        %v1304 = vpop.xlane.xlu0 %1303
        %v1305 = vsel %vm612, %v1297, -inf
        %1306 = vmax.xlane.f32.xlu0 %v1305
        %v1307 = vpop.xlane.xlu0 %1306
        %v1308 = vsel %vm612, %v1298, -inf
        %1309 = vmax.xlane.f32.xlu0 %v1308
        %v1310 = vpop.xlane.xlu0 %1309
        %v1311 = vsub.f32 %v1295, %v1301
        %v1312 = vsub.f32 %v1296, %v1304
        %v1313 = vsub.f32 %v1297, %v1307
        %v1314 = vsub.f32 %v1298, %v1310
        %v1315 = vmul.f32 %v1311, 1.442695
        %v1316 = vpow.pop %v1315
        %v1317 = vmul.f32 %v1312, 1.442695
        %v1318 = vpow.pop %v1317
        %v1319 = vmul.f32 %v1313, 1.442695
        %v1320 = vpow.pop %v1319
        %v1321 = vmul.f32 %v1314, 1.442695
        %v1322 = vpow.pop %v1321
        %v1323 = vsel %vm612, %v1316, 0.0
        %1324 = vadd.xlane.f32.xlu0 %v1323
        %v1325 = vpop.xlane.xlu0 %1324
        %v1326 = vsel %vm612, %v1318, 0.0
        %1327 = vadd.xlane.f32.xlu0 %v1326
        %v1328 = vpop.xlane.xlu0 %1327
        %v1329 = vsel %vm612, %v1320, 0.0
        %1330 = vadd.xlane.f32.xlu0 %v1329
        %v1331 = vpop.xlane.xlu0 %1330
        %v1332 = vsel %vm612, %v1322, 0.0
        %1333 = vadd.xlane.f32.xlu0 %v1332
        %v1334 = vpop.xlane.xlu0 %1333
        %v1335 = vrcp.pop %v1325
        %v1336 = vmul.f32 %v1325, %v1335
        %v1337 = vsub.f32 1.0, %v1336
        %v1338 = vmul.f32 %v1335, %v1337
        %v1339 = vadd.f32 %v1335, %v1338
        %vm1340 = vweird.f32 %v1325
        %vm1341 = vweird.f32 %v1335
        %vm1342 = vmor %vm1340, %vm1341
        %v1343 = vsel %vm1342, %v1335, %v1339
        %v1344 = vand.u32 2147483647, %v1325
        %vm1345 = vcmp.eq.f32.partialorder %v1344, 8.507059e+37
        %v1346 = vand.u32 %v1325, 2147483648
        %v1347 = vor.u32 1.1754944e-38, %v1346
        %v1348 = vsel %vm1345, %v1347, %v1343
        %v1349 = vmul.f32 1.0, %v1348
        %v1350 = vrcp.pop %v1328
        %v1351 = vmul.f32 %v1328, %v1350
        %v1352 = vsub.f32 1.0, %v1351
        %v1353 = vmul.f32 %v1350, %v1352
        %v1354 = vadd.f32 %v1350, %v1353
        %vm1355 = vweird.f32 %v1328
        %vm1356 = vweird.f32 %v1350
        %vm1357 = vmor %vm1355, %vm1356
        %v1358 = vsel %vm1357, %v1350, %v1354
        %v1359 = vand.u32 2147483647, %v1328
        %vm1360 = vcmp.eq.f32.partialorder %v1359, 8.507059e+37
        %v1361 = vand.u32 %v1328, 2147483648
        %v1362 = vor.u32 1.1754944e-38, %v1361
        %v1363 = vsel %vm1360, %v1362, %v1358
        %v1364 = vmul.f32 1.0, %v1363
        %v1365 = vrcp.pop %v1331
        %v1366 = vmul.f32 %v1331, %v1365
        %v1367 = vsub.f32 1.0, %v1366
        %v1368 = vmul.f32 %v1365, %v1367
        %v1369 = vadd.f32 %v1365, %v1368
        %vm1370 = vweird.f32 %v1331
        %vm1371 = vweird.f32 %v1365
        %vm1372 = vmor %vm1370, %vm1371
        %v1373 = vsel %vm1372, %v1365, %v1369
        %v1374 = vand.u32 2147483647, %v1331
        %vm1375 = vcmp.eq.f32.partialorder %v1374, 8.507059e+37
        %v1376 = vand.u32 %v1331, 2147483648
        %v1377 = vor.u32 1.1754944e-38, %v1376
        %v1378 = vsel %vm1375, %v1377, %v1373
        %v1379 = vmul.f32 1.0, %v1378
        %v1380 = vrcp.pop %v1334
        %v1381 = vmul.f32 %v1334, %v1380
        %v1382 = vsub.f32 1.0, %v1381
        %v1383 = vmul.f32 %v1380, %v1382
        %v1384 = vadd.f32 %v1380, %v1383
        %vm1385 = vweird.f32 %v1334
        %vm1386 = vweird.f32 %v1380
        %vm1387 = vmor %vm1385, %vm1386
        %v1388 = vsel %vm1387, %v1380, %v1384
        %v1389 = vand.u32 2147483647, %v1334
        %vm1390 = vcmp.eq.f32.partialorder %v1389, 8.507059e+37
        %v1391 = vand.u32 %v1334, 2147483648
        %v1392 = vor.u32 1.1754944e-38, %v1391
        %v1393 = vsel %vm1390, %v1392, %v1388
        %v1394 = vmul.f32 1.0, %v1393
        %v1395 = vmul.f32 %v1316, %v1349
        %v1396 = vmul.f32 %v1318, %v1364
        %v1397 = vmul.f32 %v1320, %v1379
        %v1398 = vmul.f32 %v1322, %v1394
        %v1399 = vmul.f32 %v1395, %v491
        %v1400 = vmul.f32 %v1396, %v492
        %v1401 = vmul.f32 %v1397, %v493
        %v1402 = vmul.f32 %v1398, %v494
        %s1403 = scalar_lea.vmem %s249, 24 [#allocation5]
        %1404 = vst.msk [vmem:[%s1403] sm:$0xff] %vm612, %v1399
        %1405 = vst.msk [vmem:[%s1403 + $0x20] sm:$0xff] %vm612, %v1400
        %1406 = vst.msk [vmem:[%s1403 + $0x40] sm:$0xff] %vm612, %v1401
        %1407 = vst.msk [vmem:[%s1403 + $0x60] sm:$0xff] %vm612, %v1402
        %s1408 = sand.u32 %s128, 1
        %s1409 = scalar_lea.sflag [#allocation4], %s1408
        %s1410 = sand.u32 %s128, 1
        %s1411 = smul.addr %s1410, 128
        %s1412 = scalar_lea.vmem [#allocation5], %s1411
        // Predicated region
        $region41: #{tpu_custom_call.1} parent=35 // pred_check
          %p1413 = pneg %p138
        $region42: #{tpu_custom_call.1} parent=35 // pred_check_branch
          %1415 = sbr.rel (%p1413) target = $region44
        $region43: #{tpu_custom_call.1} parent=35 // pred_region
          %s1416 = smul.u32 4, %s21
          %1418 = vsyncadd %s1409, 0
          %s1419 = smul.addr %s1416, 4
          %s1420 = smul.addr %s1419, 8
          %s1421 = scalar_lea.hbm %s4, %s1420
          %s1422 = sshll.u32 %s1412, 4
          %s1423 = int_to_ptr.vmem [resolvable:$true] %s1422
          %s1424 = sshll.u32 %s1421, 4
          %s1425 = int_to_ptr.hbm [resolvable:$true] %s1424
          %1430 = dma.vmem_to_hbm [thread:$0]  %s1423, 2048, %s1425, %s1409, 128, 128, 8
        $region44: #{tpu_custom_call.1} parent=35 // pred_fallthru
          _
      $region36: #{tpu_custom_call.1} parent=5 // pred_fallthru
        _
      %p1431 = scmp.le.s32.totalorder 2, %s16
      // Predicated region
      $region45: #{tpu_custom_call.1} parent=5 // pred_check
        %p1432 = pneg %p1431
      $region46: #{tpu_custom_call.1} parent=5 // pred_check_branch
        %1434 = sbr.rel (%p1432) target = $region48
      $region47: #{tpu_custom_call.1} parent=5 // pred_region
        %s1435 = ssub.s32 %s16, 2
        // Predicated region
        $region49: #{tpu_custom_call.1} parent=47 // pred_check
          %p1436 = pneg %p144
        $region50: #{tpu_custom_call.1} parent=47 // pred_check_branch
          %1438 = sbr.rel (%p1436) target = $region52
        $region51: #{tpu_custom_call.1} parent=47 // pred_region
          %s1439 = sand.u32 %s129, 1
          %s1440 = scalar_lea.sflag [#allocation4], %s1439
          %s1441 = sand.u32 %s129, 1
          %s1442 = smul.addr %s1441, 128
          %s1443 = scalar_lea.vmem [#allocation5], %s1442
          %1445 = dma.done %s1440, 2048
        $region52: #{tpu_custom_call.1} parent=47 // pred_fallthru
          _
      $region48: #{tpu_custom_call.1} parent=5 // pred_fallthru
        _
    $region6: #{tpu_custom_call.1} parent=1 // loop_footer
      %s20 = sadd.s32 1, %s16
    $region7: #{tpu_custom_call.1} parent=1 // loop_footer_branch
      %15 = sbr.rel target = $region3
    $region8: #{tpu_custom_call.1} parent=1 // loop_exit
      _
    %1446 = vsyncpa [#allocation3], 1
    %s1447 = scalar_lea.sflag [#allocation3], 1
    %1448 = vsyncpa %s1447, 1
    %1449 = vsyncpa [#allocation4], 1
    %s1450 = scalar_lea.sflag [#allocation4], 1
    %1451 = vsyncpa %s1450, 1

</llo_original>
